<compile_context>
chip_gen: v5e
topology: v5e:2x2
jax: 0.10.0
libtpu: 0.0.40
codegen_flags: <defaults>
</compile_context>

<pallas_src>
import jax
import jax.numpy as jnp
from jax.experimental import pallas as pl
from jax.experimental.pallas import tpu as pltpu


def fused_cnn_kernel(p_ref, wc_ref, bc_ref, wf_ref, msk_ref, fld_ref, s_ref,
                     bfc_ref, o_ref, act_ref):
    # p_ref   : [25, Bt*1024] bf16  im2col patches; lane = slot*(Bt*256) + b*256 + pixel
    # wc_ref  : [16, 25]      bf16  conv weight (out-channel, tap)
    # bc_ref  : [16, 1]       f32   conv bias (per channel, broadcast over lanes)
    # wf_ref  : [256, 160]    bf16  FC weight, wf[p, c*10+n]; rows p>=196 are zero
    # msk_ref : [Bt*16, 160]  bf16  msk[b*16+c, k] = (k // 10 == c)
    # fld_ref : [160, 128]    bf16  fld[k, n] = (k % 10 == n), cols >= 10 are zero
    # s_ref   : [Bt, Bt*16]   bf16  block-sum selection: s[b, row] = (row // 16 == b)
    # bfc_ref : [1, 128]      f32   FC bias, zero-padded past class 10
    # o_ref   : [Bt, 128]     f32   logits (cols >= 10 are zero)
    # act_ref : [Bt*16, 256]  bf16  VMEM scratch: pooled activations, FC-ready layout
    bt = o_ref.shape[0]
    q = bt * 256

    # Conv for the whole batch block: ONE transposed GEMM on the MXU.
    y = jnp.dot(wc_ref[...], p_ref[...],
                preferred_element_type=jnp.float32)                 # [16, 4*q]
    # 2x2 max-pool = max over the 4 pool-slot chunks (lane-aligned slices).
    pooled = jnp.maximum(jnp.maximum(y[:, 0:q], y[:, q:2 * q]),
                         jnp.maximum(y[:, 2 * q:3 * q], y[:, 3 * q:4 * q]))  # [16, q]
    # bias + ReLU once, after the pool (both commute with the max).
    act = jnp.maximum(pooled + bc_ref[...], 0.0).astype(jnp.bfloat16)        # [16, q]

    # Relayout (c, b*256+p) -> (b*16+c, p): Bt static sublane-offset stores
    # (16-row / 256-lane aligned copies, no XLU transpose, no matmuls).
    for b in range(bt):
        act_ref[b * 16:(b + 1) * 16, :] = act[:, b * 256:(b + 1) * 256]

    # Batched FC: ONE [Bt*16,256] x [256,160] bf16 GEMM for the whole block.
    # Zero-padded pixel rows (>=196) of wf cancel the padded pixel lanes of act.
    r = jnp.dot(act_ref[...], wf_ref[...],
                preferred_element_type=jnp.float32)                 # [Bt*16, 160]
    # Keep only each row's own channel block (exact 0/1 mask), then:
    #   g[b, k] = the (b, c=k//10) contribution, via a ones-selection GEMM,
    #   logits  = fold k -> n (sums the 16 channel contributions in f32 acc).
    rm = (r * msk_ref[...]).astype(jnp.bfloat16)                    # [Bt*16, 160]
    g = jnp.dot(s_ref[...], rm, preferred_element_type=jnp.float32)  # [Bt, 160]
    logits = jnp.dot(g.astype(jnp.bfloat16), fld_ref[...],
                     preferred_element_type=jnp.float32)            # [Bt, 128]
    # Single lane-dense store per grid step.
    o_ref[...] = logits + bfc_ref[...]


def cnn_oneblock_forward(x, conv_w, conv_b, fc_w, fc_b):
    B = x.shape[0]
    HO = WO = 14
    PIX = HO * WO  # 196 pooled pixels per channel

    # Batch-block size: big enough to amortize grid-step overhead, small enough
    # that double-buffered patches + the f32 conv slab fit v5e's ~16 MiB scoped
    # VMEM default (and v7x's 64 MiB physical) without raising vmem limits.
    if B >= 64:
        Bt = 32
    elif B >= 16:
        Bt = 16
    else:
        Bt = 8
    Bp = ((B + Bt - 1) // Bt) * Bt
    Nb = Bp // Bt
    if Bp != B:
        x = jnp.pad(x, ((0, Bp - B), (0, 0), (0, 0), (0, 0)))

    # ---- host glue: im2col in bf16 (early cast), pool-slot-major lanes ----
    x2 = x[:, 0].astype(jnp.bfloat16)                       # [Bp, 28, 28] (C_in = 1)
    xp = jnp.pad(x2, ((0, 0), (2, 2), (2, 2)))              # conv padding = 2
    taps = [xp[:, dh:dh + 28, dw:dw + 28] for dh in range(5) for dw in range(5)]
    pt = jnp.stack(taps, axis=0)                            # [25, Bp, 28, 28]
    pt = pt.reshape(25, Nb, Bt, HO, 2, WO, 2)               # t, blk, b, i, ph, j, pw
    pt = pt.transpose(0, 1, 4, 6, 2, 3, 5)                  # t, blk, ph, pw, b, i, j
    pt = pt.reshape(25, Nb, 4, Bt, PIX)
    pt = jnp.pad(pt, ((0, 0), (0, 0), (0, 0), (0, 0), (0, 256 - PIX)))
    patches = pt.reshape(25, Bp * 1024)                     # lane = s*(Bt*256)+b*256+p
    # TODO(synk): build the tap layout in-kernel from raw padded [Bt,32,32]
    # images to avoid shipping the 25x-expanded patch tensor through HBM.

    wc = conv_w.reshape(16, 25).astype(jnp.bfloat16)        # [16, 25]
    bc = conv_b.reshape(16, 1).astype(jnp.float32)          # [16, 1]

    # FC weight permuted to (pooled-pixel row, channel*10+class col) layout.
    # Rows >= 196 are EXACTLY zero: this cancels the zero-padded pixel lanes
    # (which carry act = relu(conv_bias)).  Keep this invariant if repacking.
    wf = fc_w.reshape(10, 16, PIX).transpose(2, 1, 0)       # [196, 16, 10]
    wf = jnp.pad(wf, ((0, 256 - PIX), (0, 0), (0, 0)))      # [256, 16, 10]
    wf = wf.reshape(256, 160).astype(jnp.bfloat16)          # wf[p, c*10 + n]

    rows = jnp.arange(Bt * 16)
    kk = jnp.arange(160)
    msk = (kk[None, :] // 10 == (rows % 16)[:, None]).astype(jnp.bfloat16)      # [Bt*16,160]
    fld = (kk[:, None] % 10 == jnp.arange(128)[None, :]).astype(jnp.bfloat16)   # [160,128]
    ssum = ((rows // 16)[None, :] == jnp.arange(Bt)[:, None]).astype(jnp.bfloat16)  # [Bt,Bt*16]
    bfc = jnp.pad(fc_b, (0, 128 - 10)).reshape(1, 128).astype(jnp.float32)      # [1,128]

    out = pl.pallas_call(
        fused_cnn_kernel,
        out_shape=jax.ShapeDtypeStruct((Bp, 128), jnp.float32),
        grid=(Nb,),
        in_specs=[
            pl.BlockSpec((25, Bt * 1024), lambda i: (0, i)),   # patches (blocked on batch)
            pl.BlockSpec((16, 25), lambda i: (0, 0)),          # conv weight
            pl.BlockSpec((16, 1), lambda i: (0, 0)),           # conv bias
            pl.BlockSpec((256, 160), lambda i: (0, 0)),        # FC weight
            pl.BlockSpec((Bt * 16, 160), lambda i: (0, 0)),    # diag mask
            pl.BlockSpec((160, 128), lambda i: (0, 0)),        # class fold
            pl.BlockSpec((Bt, Bt * 16), lambda i: (0, 0)),     # block-sum selection
            pl.BlockSpec((1, 128), lambda i: (0, 0)),          # FC bias (padded)
        ],
        out_specs=pl.BlockSpec((Bt, 128), lambda i: (i, 0)),
        scratch_shapes=[pltpu.VMEM((Bt * 16, 256), jnp.bfloat16)],
        compiler_params=pltpu.CompilerParams(dimension_semantics=("parallel",)),
    )(patches, wc, bc, wf, msk, fld, ssum, bfc)
    return out[:B, :10]


def reference_forward(x, conv_w, conv_b, fc_w, fc_b):
    """Pure-JAX reference matching the PyTorch forward pass."""
    y = jax.lax.conv_general_dilated(
        x, conv_w, (1, 1), ((2, 2), (2, 2)),
        dimension_numbers=("NCHW", "OIHW", "NCHW"))
    y = jnp.maximum(y + conv_b[None, :, None, None], 0.0)
    B, C, H, W = y.shape
    y = y.reshape(B, C, H // 2, 2, W // 2, 2).max(axis=(3, 5))
    y = y.reshape(B, -1)
    return y @ fc_w.T + fc_b


if __name__ == "__main__":
    B = 2
    key = jax.random.PRNGKey(0)
    kx, k1, k2, k3, k4 = jax.random.split(key, 5)

    # Input: MNIST-like NCHW (the fc layer 16*14*14 fixes spatial = 28x28).
    x = jax.random.normal(kx, (B, 1, 28, 28), jnp.float32)

    # Deterministic PyTorch-style (uniform +/- 1/sqrt(fan_in)) parameter init.
    k_conv = 1.0 / (1 * 5 * 5) ** 0.5
    conv_w = jax.random.uniform(k1, (16, 1, 5, 5), jnp.float32, -k_conv, k_conv)
    conv_b = jax.random.uniform(k2, (16,), jnp.float32, -k_conv, k_conv)
    k_fc = 1.0 / (16 * 14 * 14) ** 0.5
    fc_w = jax.random.uniform(k3, (10, 16 * 14 * 14), jnp.float32, -k_fc, k_fc)
    fc_b = jax.random.uniform(k4, (10,), jnp.float32, -k_fc, k_fc)

    out = jax.jit(cnn_oneblock_forward)(x, conv_w, conv_b, fc_w, fc_b)
    out = jax.block_until_ready(out)

    ref = reference_forward(x, conv_w, conv_b, fc_w, fc_b)
    assert out.shape == (B, 10), out.shape
    assert jnp.all(jnp.isfinite(out))
    err = float(jnp.max(jnp.abs(out - ref)))
    assert jnp.allclose(out, ref, atol=2e-2, rtol=2e-2), err

    print("KERNEL_OK")
</pallas_src>

<mosaic_0001>
module attributes {stable_mosaic.version = 11 : i64} {
  func.func @fused_cnn_kernel(%arg0: i32, %arg1: memref<25x8192xbf16, #tpu.memory_space<vmem>>, %arg2: memref<16x25xbf16, #tpu.memory_space<vmem>>, %arg3: memref<16x1xf32, #tpu.memory_space<vmem>>, %arg4: memref<256x160xbf16, #tpu.memory_space<vmem>>, %arg5: memref<128x160xbf16, #tpu.memory_space<vmem>>, %arg6: memref<160x128xbf16, #tpu.memory_space<vmem>>, %arg7: memref<8x128xbf16, #tpu.memory_space<vmem>>, %arg8: memref<1x128xf32, #tpu.memory_space<vmem>>, %arg9: memref<8x128xf32, #tpu.memory_space<vmem>>, %arg10: memref<128x256xbf16, #tpu.memory_space<vmem>>) attributes {dimension_semantics = [#tpu.dimension_semantics<parallel>], iteration_bounds = array<i64: 1>, scalar_prefetch = 0 : i64, scratch_operands = 1 : i64, tpu.core_type = #tpu.core_type<tc>, window_params = [{transform_indices = @transform_0, window_bounds = array<i64: 25, 8192>}, {pipeline_mode = #tpu.pipeline_mode<synchronous>, transform_indices = @transform_1, window_bounds = array<i64: 16, 25>}, {pipeline_mode = #tpu.pipeline_mode<synchronous>, transform_indices = @transform_2, window_bounds = array<i64: 16, 1>}, {pipeline_mode = #tpu.pipeline_mode<synchronous>, transform_indices = @transform_3, window_bounds = array<i64: 256, 160>}, {pipeline_mode = #tpu.pipeline_mode<synchronous>, transform_indices = @transform_4, window_bounds = array<i64: 128, 160>}, {pipeline_mode = #tpu.pipeline_mode<synchronous>, transform_indices = @transform_5, window_bounds = array<i64: 160, 128>}, {pipeline_mode = #tpu.pipeline_mode<synchronous>, transform_indices = @transform_6, window_bounds = array<i64: 8, 128>}, {pipeline_mode = #tpu.pipeline_mode<synchronous>, transform_indices = @transform_7, window_bounds = array<i64: 1, 128>}, {transform_indices = @transform_8, window_bounds = array<i64: 8, 128>}]} {
    %c0 = arith.constant 0 : index
    %c0_0 = arith.constant 0 : index
    %0 = vector.load %arg2[%c0, %c0_0] : memref<16x25xbf16, #tpu.memory_space<vmem>>, vector<16x25xbf16>
    %c0_1 = arith.constant 0 : index
    %c0_2 = arith.constant 0 : index
    %1 = vector.load %arg1[%c0_1, %c0_2] : memref<25x8192xbf16, #tpu.memory_space<vmem>>, vector<25x8192xbf16>
    %cst = arith.constant dense<0.000000e+00> : vector<16x8192xf32>
    %2 = tpu.matmul %0, %1, %cst {dimension_numbers = #tpu.dot_dimension_numbers<[1], [0], [0], [1], [0, 0, 1, 1], [], []>} : vector<16x25xbf16>, vector<25x8192xbf16>, vector<16x8192xf32> -> vector<16x8192xf32>
    %3 = vector.extract_strided_slice %2 {offsets = [0, 0], sizes = [16, 2048], strides = [1, 1]} : vector<16x8192xf32> to vector<16x2048xf32>
    %4 = vector.extract_strided_slice %2 {offsets = [0, 2048], sizes = [16, 2048], strides = [1, 1]} : vector<16x8192xf32> to vector<16x2048xf32>
    %5 = arith.maximumf %3, %4 : vector<16x2048xf32>
    %6 = vector.extract_strided_slice %2 {offsets = [0, 4096], sizes = [16, 2048], strides = [1, 1]} : vector<16x8192xf32> to vector<16x2048xf32>
    %7 = vector.extract_strided_slice %2 {offsets = [0, 6144], sizes = [16, 2048], strides = [1, 1]} : vector<16x8192xf32> to vector<16x2048xf32>
    %8 = arith.maximumf %6, %7 : vector<16x2048xf32>
    %9 = arith.maximumf %5, %8 : vector<16x2048xf32>
    %c0_3 = arith.constant 0 : index
    %c0_4 = arith.constant 0 : index
    %10 = vector.load %arg3[%c0_3, %c0_4] : memref<16x1xf32, #tpu.memory_space<vmem>>, vector<16x1xf32>
    %11 = vector.broadcast %10 : vector<16x1xf32> to vector<16x2048xf32>
    %12 = arith.addf %9, %11 : vector<16x2048xf32>
    %cst_5 = arith.constant 0.000000e+00 : f32
    %13 = vector.broadcast %cst_5 : f32 to vector<16x2048xf32>
    %14 = arith.maximumf %12, %13 : vector<16x2048xf32>
    %15 = arith.truncf %14 : vector<16x2048xf32> to vector<16x2048xbf16>
    %16 = vector.extract_strided_slice %15 {offsets = [0, 0], sizes = [16, 256], strides = [1, 1]} : vector<16x2048xbf16> to vector<16x256xbf16>
    %c0_6 = arith.constant 0 : index
    %c0_7 = arith.constant 0 : index
    %17 = vector.load %arg10[%c0_6, %c0_7] : memref<128x256xbf16, #tpu.memory_space<vmem>>, vector<16x256xbf16>
    tpu.vector_store %arg10[%c0_6, %c0_7], %16 {strides = array<i32>} : memref<128x256xbf16, #tpu.memory_space<vmem>>, vector<16x256xbf16>,
    %18 = vector.extract_strided_slice %15 {offsets = [0, 256], sizes = [16, 256], strides = [1, 1]} : vector<16x2048xbf16> to vector<16x256xbf16>
    %c16 = arith.constant 16 : index
    %c0_8 = arith.constant 0 : index
    %19 = vector.load %arg10[%c16, %c0_8] : memref<128x256xbf16, #tpu.memory_space<vmem>>, vector<16x256xbf16>
    tpu.vector_store %arg10[%c16, %c0_8], %18 {strides = array<i32>} : memref<128x256xbf16, #tpu.memory_space<vmem>>, vector<16x256xbf16>,
    %20 = vector.extract_strided_slice %15 {offsets = [0, 512], sizes = [16, 256], strides = [1, 1]} : vector<16x2048xbf16> to vector<16x256xbf16>
    %c32 = arith.constant 32 : index
    %c0_9 = arith.constant 0 : index
    %21 = vector.load %arg10[%c32, %c0_9] : memref<128x256xbf16, #tpu.memory_space<vmem>>, vector<16x256xbf16>
    tpu.vector_store %arg10[%c32, %c0_9], %20 {strides = array<i32>} : memref<128x256xbf16, #tpu.memory_space<vmem>>, vector<16x256xbf16>,
    %22 = vector.extract_strided_slice %15 {offsets = [0, 768], sizes = [16, 256], strides = [1, 1]} : vector<16x2048xbf16> to vector<16x256xbf16>
    %c48 = arith.constant 48 : index
    %c0_10 = arith.constant 0 : index
    %23 = vector.load %arg10[%c48, %c0_10] : memref<128x256xbf16, #tpu.memory_space<vmem>>, vector<16x256xbf16>
    tpu.vector_store %arg10[%c48, %c0_10], %22 {strides = array<i32>} : memref<128x256xbf16, #tpu.memory_space<vmem>>, vector<16x256xbf16>,
    %24 = vector.extract_strided_slice %15 {offsets = [0, 1024], sizes = [16, 256], strides = [1, 1]} : vector<16x2048xbf16> to vector<16x256xbf16>
    %c64 = arith.constant 64 : index
    %c0_11 = arith.constant 0 : index
    %25 = vector.load %arg10[%c64, %c0_11] : memref<128x256xbf16, #tpu.memory_space<vmem>>, vector<16x256xbf16>
    tpu.vector_store %arg10[%c64, %c0_11], %24 {strides = array<i32>} : memref<128x256xbf16, #tpu.memory_space<vmem>>, vector<16x256xbf16>,
    %26 = vector.extract_strided_slice %15 {offsets = [0, 1280], sizes = [16, 256], strides = [1, 1]} : vector<16x2048xbf16> to vector<16x256xbf16>
    %c80 = arith.constant 80 : index
    %c0_12 = arith.constant 0 : index
    %27 = vector.load %arg10[%c80, %c0_12] : memref<128x256xbf16, #tpu.memory_space<vmem>>, vector<16x256xbf16>
    tpu.vector_store %arg10[%c80, %c0_12], %26 {strides = array<i32>} : memref<128x256xbf16, #tpu.memory_space<vmem>>, vector<16x256xbf16>,
    %28 = vector.extract_strided_slice %15 {offsets = [0, 1536], sizes = [16, 256], strides = [1, 1]} : vector<16x2048xbf16> to vector<16x256xbf16>
    %c96 = arith.constant 96 : index
    %c0_13 = arith.constant 0 : index
    %29 = vector.load %arg10[%c96, %c0_13] : memref<128x256xbf16, #tpu.memory_space<vmem>>, vector<16x256xbf16>
    tpu.vector_store %arg10[%c96, %c0_13], %28 {strides = array<i32>} : memref<128x256xbf16, #tpu.memory_space<vmem>>, vector<16x256xbf16>,
    %30 = vector.extract_strided_slice %15 {offsets = [0, 1792], sizes = [16, 256], strides = [1, 1]} : vector<16x2048xbf16> to vector<16x256xbf16>
    %c112 = arith.constant 112 : index
    %c0_14 = arith.constant 0 : index
    %31 = vector.load %arg10[%c112, %c0_14] : memref<128x256xbf16, #tpu.memory_space<vmem>>, vector<16x256xbf16>
    tpu.vector_store %arg10[%c112, %c0_14], %30 {strides = array<i32>} : memref<128x256xbf16, #tpu.memory_space<vmem>>, vector<16x256xbf16>,
    %c0_15 = arith.constant 0 : index
    %c0_16 = arith.constant 0 : index
    %32 = vector.load %arg10[%c0_15, %c0_16] : memref<128x256xbf16, #tpu.memory_space<vmem>>, vector<128x256xbf16>
    %c0_17 = arith.constant 0 : index
    %c0_18 = arith.constant 0 : index
    %33 = vector.load %arg4[%c0_17, %c0_18] : memref<256x160xbf16, #tpu.memory_space<vmem>>, vector<256x160xbf16>
    %cst_19 = arith.constant dense<0.000000e+00> : vector<128x160xf32>
    %34 = tpu.matmul %32, %33, %cst_19 {dimension_numbers = #tpu.dot_dimension_numbers<[1], [0], [0], [1], [0, 0, 1, 1], [], []>} : vector<128x256xbf16>, vector<256x160xbf16>, vector<128x160xf32> -> vector<128x160xf32>
    %c0_20 = arith.constant 0 : index
    %c0_21 = arith.constant 0 : index
    %35 = vector.load %arg5[%c0_20, %c0_21] : memref<128x160xbf16, #tpu.memory_space<vmem>>, vector<128x160xbf16>
    %36 = arith.extf %35 : vector<128x160xbf16> to vector<128x160xf32>
    %37 = arith.mulf %34, %36 : vector<128x160xf32>
    %38 = arith.truncf %37 : vector<128x160xf32> to vector<128x160xbf16>
    %c0_22 = arith.constant 0 : index
    %c0_23 = arith.constant 0 : index
    %39 = vector.load %arg7[%c0_22, %c0_23] : memref<8x128xbf16, #tpu.memory_space<vmem>>, vector<8x128xbf16>
    %cst_24 = arith.constant dense<0.000000e+00> : vector<8x160xf32>
    %40 = tpu.matmul %39, %38, %cst_24 {dimension_numbers = #tpu.dot_dimension_numbers<[1], [0], [0], [1], [0, 0, 1, 1], [], []>} : vector<8x128xbf16>, vector<128x160xbf16>, vector<8x160xf32> -> vector<8x160xf32>
    %41 = arith.truncf %40 : vector<8x160xf32> to vector<8x160xbf16>
    %c0_25 = arith.constant 0 : index
    %c0_26 = arith.constant 0 : index
    %42 = vector.load %arg6[%c0_25, %c0_26] : memref<160x128xbf16, #tpu.memory_space<vmem>>, vector<160x128xbf16>
    %cst_27 = arith.constant dense<0.000000e+00> : vector<8x128xf32>
    %43 = tpu.matmul %41, %42, %cst_27 {dimension_numbers = #tpu.dot_dimension_numbers<[1], [0], [0], [1], [0, 0, 1, 1], [], []>} : vector<8x160xbf16>, vector<160x128xbf16>, vector<8x128xf32> -> vector<8x128xf32>
    %c0_28 = arith.constant 0 : index
    %c0_29 = arith.constant 0 : index
    %44 = vector.load %arg8[%c0_28, %c0_29] : memref<1x128xf32, #tpu.memory_space<vmem>>, vector<1x128xf32>
    %45 = vector.broadcast %44 : vector<1x128xf32> to vector<8x128xf32>
    %46 = arith.addf %43, %45 : vector<8x128xf32>
    %c0_30 = arith.constant 0 : index
    %c0_31 = arith.constant 0 : index
    %47 = vector.load %arg9[%c0_30, %c0_31] : memref<8x128xf32, #tpu.memory_space<vmem>>, vector<8x128xf32>
    tpu.vector_store %arg9[%c0_30, %c0_31], %46 {strides = array<i32>} : memref<8x128xf32, #tpu.memory_space<vmem>>, vector<8x128xf32>,
    return
  }
  func.func @transform_0(%arg0: i32) -> (i32, i32) {
    %c0_i32 = arith.constant 0 : i32
    %c0_i32_0 = arith.constant 0 : i32
    return %c0_i32, %arg0 : i32, i32
  }
  func.func @transform_1(%arg0: i32) -> (i32, i32) {
    %c0_i32 = arith.constant 0 : i32
    %c0_i32_0 = arith.constant 0 : i32
    %c0_i32_1 = arith.constant 0 : i32
    return %c0_i32, %c0_i32_0 : i32, i32
  }
  func.func @transform_2(%arg0: i32) -> (i32, i32) {
    %c0_i32 = arith.constant 0 : i32
    %c0_i32_0 = arith.constant 0 : i32
    %c0_i32_1 = arith.constant 0 : i32
    return %c0_i32, %c0_i32_0 : i32, i32
  }
  func.func @transform_3(%arg0: i32) -> (i32, i32) {
    %c0_i32 = arith.constant 0 : i32
    %c0_i32_0 = arith.constant 0 : i32
    %c0_i32_1 = arith.constant 0 : i32
    return %c0_i32, %c0_i32_0 : i32, i32
  }
  func.func @transform_4(%arg0: i32) -> (i32, i32) {
    %c0_i32 = arith.constant 0 : i32
    %c0_i32_0 = arith.constant 0 : i32
    %c0_i32_1 = arith.constant 0 : i32
    return %c0_i32, %c0_i32_0 : i32, i32
  }
  func.func @transform_5(%arg0: i32) -> (i32, i32) {
    %c0_i32 = arith.constant 0 : i32
    %c0_i32_0 = arith.constant 0 : i32
    %c0_i32_1 = arith.constant 0 : i32
    return %c0_i32, %c0_i32_0 : i32, i32
  }
  func.func @transform_6(%arg0: i32) -> (i32, i32) {
    %c0_i32 = arith.constant 0 : i32
    %c0_i32_0 = arith.constant 0 : i32
    %c0_i32_1 = arith.constant 0 : i32
    return %c0_i32, %c0_i32_0 : i32, i32
  }
  func.func @transform_7(%arg0: i32) -> (i32, i32) {
    %c0_i32 = arith.constant 0 : i32
    %c0_i32_0 = arith.constant 0 : i32
    %c0_i32_1 = arith.constant 0 : i32
    return %c0_i32, %c0_i32_0 : i32, i32
  }
  func.func @transform_8(%arg0: i32) -> (i32, i32) {
    %c0_i32 = arith.constant 0 : i32
    %c0_i32_0 = arith.constant 0 : i32
    return %arg0, %c0_i32 : i32, i32
  }
}

</mosaic_0001>

<llo_original>
// kernel: cnn_oneblock_forward.1
$region0: #{cnn_oneblock_forward.1}
  #allocation0 [shape = 'u32[]', space=smem, size = 0x4, offset = 0x4, fixed_abs, tag = 'smem constant byte address 0x4 - core index']
  #allocation1 [shape = 'u32[72,128]{1,0:T(1,128)}', space=vmem, size = 0x9000, scoped, tag = 'internal scratch']
  #allocation2 [shape = 'bf16[128,256]{1,0:T(8,128)(2,1)}', space=vmem, size = 0x10000, scoped, tag = 'scratch operand']
  %s0 = inlined_call_operand.vmem [shape: bf16[25,8192], index: 0, kind: input, shape index: {}]
  %s1 = inlined_call_operand.vmem [shape: bf16[16,25], index: 1, kind: input, shape index: {}]
  %s2 = inlined_call_operand.vmem [shape: f32[16,1], index: 2, kind: input, shape index: {}]
  %s3 = inlined_call_operand.vmem [shape: bf16[256,160], index: 3, kind: input, shape index: {}]
  %s4 = inlined_call_operand.vmem [shape: bf16[128,160], index: 4, kind: input, shape index: {}]
  %s5 = inlined_call_operand.vmem [shape: bf16[160,128], index: 5, kind: input, shape index: {}]
  %s6 = inlined_call_operand.vmem [shape: bf16[8,128], index: 6, kind: input, shape index: {}]
  %s7 = inlined_call_operand.vmem [shape: f32[1,128], index: 7, kind: input, shape index: {}]
  %s8 = inlined_call_operand.vmem [shape: f32[8,128], index: 8, kind: output, shape index: {}]
  %s9 = sld [smem:[#allocation0]]
  $region42: #{cnn_oneblock_forward.1} parent=0
    _
  %s11 = ssub.s32 1, %s9
  %s12 = scalar_select 0, %s11, %s9
  // Predicated region
  $region2: #{cnn_oneblock_forward.1} parent=0 // pred_check
    _
  $region3: #{cnn_oneblock_forward.1} parent=0 // pred_check_branch
    %14 = sbr.rel (0) target = $region5
  $region4: #{cnn_oneblock_forward.1} parent=0 // pred_region
    _
  $region5: #{cnn_oneblock_forward.1} parent=0 // pred_fallthru
    _
  // Predicated region
  $region6: #{cnn_oneblock_forward.1} parent=0 // pred_check
    _
  $region7: #{cnn_oneblock_forward.1} parent=0 // pred_check_branch
    %16 = sbr.rel (0) target = $region9
  $region8: #{cnn_oneblock_forward.1} parent=0 // pred_region
    _
  $region9: #{cnn_oneblock_forward.1} parent=0 // pred_fallthru
    _
  // Predicated region
  $region10: #{cnn_oneblock_forward.1} parent=0 // pred_check
    _
  $region11: #{cnn_oneblock_forward.1} parent=0 // pred_check_branch
    %18 = sbr.rel (0) target = $region13
  $region12: #{cnn_oneblock_forward.1} parent=0 // pred_region
    _
  $region13: #{cnn_oneblock_forward.1} parent=0 // pred_fallthru
    _
  // Predicated region
  $region14: #{cnn_oneblock_forward.1} parent=0 // pred_check
    _
  $region15: #{cnn_oneblock_forward.1} parent=0 // pred_check_branch
    %20 = sbr.rel (0) target = $region17
  $region16: #{cnn_oneblock_forward.1} parent=0 // pred_region
    _
  $region17: #{cnn_oneblock_forward.1} parent=0 // pred_fallthru
    _
  // Predicated region
  $region18: #{cnn_oneblock_forward.1} parent=0 // pred_check
    _
  $region19: #{cnn_oneblock_forward.1} parent=0 // pred_check_branch
    %22 = sbr.rel (0) target = $region21
  $region20: #{cnn_oneblock_forward.1} parent=0 // pred_region
    _
  $region21: #{cnn_oneblock_forward.1} parent=0 // pred_fallthru
    _
  // Predicated region
  $region22: #{cnn_oneblock_forward.1} parent=0 // pred_check
    _
  $region23: #{cnn_oneblock_forward.1} parent=0 // pred_check_branch
    %24 = sbr.rel (0) target = $region25
  $region24: #{cnn_oneblock_forward.1} parent=0 // pred_region
    _
  $region25: #{cnn_oneblock_forward.1} parent=0 // pred_fallthru
    _
  // Predicated region
  $region26: #{cnn_oneblock_forward.1} parent=0 // pred_check
    _
  $region27: #{cnn_oneblock_forward.1} parent=0 // pred_check_branch
    %26 = sbr.rel (0) target = $region29
  $region28: #{cnn_oneblock_forward.1} parent=0 // pred_region
    _
  $region29: #{cnn_oneblock_forward.1} parent=0 // pred_fallthru
    _
  // Predicated region
  $region30: #{cnn_oneblock_forward.1} parent=0 // pred_check
    _
  $region31: #{cnn_oneblock_forward.1} parent=0 // pred_check_branch
    %28 = sbr.rel (0) target = $region33
  $region32: #{cnn_oneblock_forward.1} parent=0 // pred_region
    _
  $region33: #{cnn_oneblock_forward.1} parent=0 // pred_fallthru
    _
  %v30 = vld [vmem:[%s1] sm:$0xf]
  %v31 = vld [vmem:[%s1 + $0x4] sm:$0xf]
  %v32 = vld [vmem:[%s0] sm:$0xff]
  %v33 = vld [vmem:[%s0 + $0x8] sm:$0xff]
  %v34 = vld [vmem:[%s0 + $0x10] sm:$0xff]
  %v35 = vld [vmem:[%s0 + $0x18] sm:$0xff]
  %v36 = vld [vmem:[%s0 + $0x20] sm:$0xff]
  %v37 = vld [vmem:[%s0 + $0x28] sm:$0xff]
  %v38 = vld [vmem:[%s0 + $0x30] sm:$0xff]
  %v39 = vld [vmem:[%s0 + $0x38] sm:$0xff]
  %v40 = vld [vmem:[%s0 + $0x40] sm:$0xff]
  %v41 = vld [vmem:[%s0 + $0x48] sm:$0xff]
  %v42 = vld [vmem:[%s0 + $0x50] sm:$0xff]
  %v43 = vld [vmem:[%s0 + $0x58] sm:$0xff]
  %v44 = vld [vmem:[%s0 + $0x60] sm:$0xff]
  %v45 = vld [vmem:[%s0 + $0x68] sm:$0xff]
  %v46 = vld [vmem:[%s0 + $0x70] sm:$0xff]
  %v47 = vld [vmem:[%s0 + $0x78] sm:$0xff]
  %v48 = vld [vmem:[%s0 + $0x80] sm:$0xff]
  %v49 = vld [vmem:[%s0 + $0x88] sm:$0xff]
  %v50 = vld [vmem:[%s0 + $0x90] sm:$0xff]
  %v51 = vld [vmem:[%s0 + $0x98] sm:$0xff]
  %v52 = vld [vmem:[%s0 + $0xa0] sm:$0xff]
  %v53 = vld [vmem:[%s0 + $0xa8] sm:$0xff]
  %v54 = vld [vmem:[%s0 + $0xb0] sm:$0xff]
  %v55 = vld [vmem:[%s0 + $0xb8] sm:$0xff]
  %v56 = vld [vmem:[%s0 + $0xc0] sm:$0xff]
  %v57 = vld [vmem:[%s0 + $0xc8] sm:$0xff]
  %v58 = vld [vmem:[%s0 + $0xd0] sm:$0xff]
  %v59 = vld [vmem:[%s0 + $0xd8] sm:$0xff]
  %v60 = vld [vmem:[%s0 + $0xe0] sm:$0xff]
  %v61 = vld [vmem:[%s0 + $0xe8] sm:$0xff]
  %v62 = vld [vmem:[%s0 + $0xf0] sm:$0xff]
  %v63 = vld [vmem:[%s0 + $0xf8] sm:$0xff]
  %v64 = vld [vmem:[%s0 + $0x100] sm:$0xff]
  %v65 = vld [vmem:[%s0 + $0x108] sm:$0xff]
  %v66 = vld [vmem:[%s0 + $0x110] sm:$0xff]
  %v67 = vld [vmem:[%s0 + $0x118] sm:$0xff]
  %v68 = vld [vmem:[%s0 + $0x120] sm:$0xff]
  %v69 = vld [vmem:[%s0 + $0x128] sm:$0xff]
  %v70 = vld [vmem:[%s0 + $0x130] sm:$0xff]
  %v71 = vld [vmem:[%s0 + $0x138] sm:$0xff]
  %v72 = vld [vmem:[%s0 + $0x140] sm:$0xff]
  %v73 = vld [vmem:[%s0 + $0x148] sm:$0xff]
  %v74 = vld [vmem:[%s0 + $0x150] sm:$0xff]
  %v75 = vld [vmem:[%s0 + $0x158] sm:$0xff]
  %v76 = vld [vmem:[%s0 + $0x160] sm:$0xff]
  %v77 = vld [vmem:[%s0 + $0x168] sm:$0xff]
  %v78 = vld [vmem:[%s0 + $0x170] sm:$0xff]
  %v79 = vld [vmem:[%s0 + $0x178] sm:$0xff]
  %v80 = vld [vmem:[%s0 + $0x180] sm:$0xff]
  %v81 = vld [vmem:[%s0 + $0x188] sm:$0xff]
  %v82 = vld [vmem:[%s0 + $0x190] sm:$0xff]
  %v83 = vld [vmem:[%s0 + $0x198] sm:$0xff]
  %v84 = vld [vmem:[%s0 + $0x1a0] sm:$0xff]
  %v85 = vld [vmem:[%s0 + $0x1a8] sm:$0xff]
  %v86 = vld [vmem:[%s0 + $0x1b0] sm:$0xff]
  %v87 = vld [vmem:[%s0 + $0x1b8] sm:$0xff]
  %v88 = vld [vmem:[%s0 + $0x1c0] sm:$0xff]
  %v89 = vld [vmem:[%s0 + $0x1c8] sm:$0xff]
  %v90 = vld [vmem:[%s0 + $0x1d0] sm:$0xff]
  %v91 = vld [vmem:[%s0 + $0x1d8] sm:$0xff]
  %v92 = vld [vmem:[%s0 + $0x1e0] sm:$0xff]
  %v93 = vld [vmem:[%s0 + $0x1e8] sm:$0xff]
  %v94 = vld [vmem:[%s0 + $0x1f0] sm:$0xff]
  %v95 = vld [vmem:[%s0 + $0x1f8] sm:$0xff]
  %v96 = vld [vmem:[%s0 + $0x200] sm:$0xff]
  %v97 = vld [vmem:[%s0 + $0x208] sm:$0xff]
  %v98 = vld [vmem:[%s0 + $0x210] sm:$0xff]
  %v99 = vld [vmem:[%s0 + $0x218] sm:$0xff]
  %v100 = vld [vmem:[%s0 + $0x220] sm:$0xff]
  %v101 = vld [vmem:[%s0 + $0x228] sm:$0xff]
  %v102 = vld [vmem:[%s0 + $0x230] sm:$0xff]
  %v103 = vld [vmem:[%s0 + $0x238] sm:$0xff]
  %v104 = vld [vmem:[%s0 + $0x240] sm:$0xff]
  %v105 = vld [vmem:[%s0 + $0x248] sm:$0xff]
  %v106 = vld [vmem:[%s0 + $0x250] sm:$0xff]
  %v107 = vld [vmem:[%s0 + $0x258] sm:$0xff]
  %v108 = vld [vmem:[%s0 + $0x260] sm:$0xff]
  %v109 = vld [vmem:[%s0 + $0x268] sm:$0xff]
  %v110 = vld [vmem:[%s0 + $0x270] sm:$0xff]
  %v111 = vld [vmem:[%s0 + $0x278] sm:$0xff]
  %v112 = vld [vmem:[%s0 + $0x280] sm:$0xff]
  %v113 = vld [vmem:[%s0 + $0x288] sm:$0xff]
  %v114 = vld [vmem:[%s0 + $0x290] sm:$0xff]
  %v115 = vld [vmem:[%s0 + $0x298] sm:$0xff]
  %v116 = vld [vmem:[%s0 + $0x2a0] sm:$0xff]
  %v117 = vld [vmem:[%s0 + $0x2a8] sm:$0xff]
  %v118 = vld [vmem:[%s0 + $0x2b0] sm:$0xff]
  %v119 = vld [vmem:[%s0 + $0x2b8] sm:$0xff]
  %v120 = vld [vmem:[%s0 + $0x2c0] sm:$0xff]
  %v121 = vld [vmem:[%s0 + $0x2c8] sm:$0xff]
  %v122 = vld [vmem:[%s0 + $0x2d0] sm:$0xff]
  %v123 = vld [vmem:[%s0 + $0x2d8] sm:$0xff]
  %v124 = vld [vmem:[%s0 + $0x2e0] sm:$0xff]
  %v125 = vld [vmem:[%s0 + $0x2e8] sm:$0xff]
  %v126 = vld [vmem:[%s0 + $0x2f0] sm:$0xff]
  %v127 = vld [vmem:[%s0 + $0x2f8] sm:$0xff]
  %v128 = vld [vmem:[%s0 + $0x300] sm:$0x11]
  %v129 = vld [vmem:[%s0 + $0x308] sm:$0x11]
  %v130 = vld [vmem:[%s0 + $0x310] sm:$0x11]
  %v131 = vld [vmem:[%s0 + $0x318] sm:$0x11]
  %v132 = vld [vmem:[%s0 + $0x320] sm:$0x11]
  %v133 = vld [vmem:[%s0 + $0x328] sm:$0x11]
  %v134 = vld [vmem:[%s0 + $0x330] sm:$0x11]
  %v135 = vld [vmem:[%s0 + $0x338] sm:$0x11]
  %v136 = vld [vmem:[%s0 + $0x340] sm:$0x11]
  %v137 = vld [vmem:[%s0 + $0x348] sm:$0x11]
  %v138 = vld [vmem:[%s0 + $0x350] sm:$0x11]
  %v139 = vld [vmem:[%s0 + $0x358] sm:$0x11]
  %v140 = vld [vmem:[%s0 + $0x360] sm:$0x11]
  %v141 = vld [vmem:[%s0 + $0x368] sm:$0x11]
  %v142 = vld [vmem:[%s0 + $0x370] sm:$0x11]
  %v143 = vld [vmem:[%s0 + $0x378] sm:$0x11]
  %v144 = vld [vmem:[%s0 + $0x380] sm:$0x11]
  %v145 = vld [vmem:[%s0 + $0x388] sm:$0x11]
  %v146 = vld [vmem:[%s0 + $0x390] sm:$0x11]
  %v147 = vld [vmem:[%s0 + $0x398] sm:$0x11]
  %v148 = vld [vmem:[%s0 + $0x3a0] sm:$0x11]
  %v149 = vld [vmem:[%s0 + $0x3a8] sm:$0x11]
  %v150 = vld [vmem:[%s0 + $0x3b0] sm:$0x11]
  %v151 = vld [vmem:[%s0 + $0x3b8] sm:$0x11]
  %v152 = vld [vmem:[%s0 + $0x3c0] sm:$0x11]
  %v153 = vld [vmem:[%s0 + $0x3c8] sm:$0x11]
  %v154 = vld [vmem:[%s0 + $0x3d0] sm:$0x11]
  %v155 = vld [vmem:[%s0 + $0x3d8] sm:$0x11]
  %v156 = vld [vmem:[%s0 + $0x3e0] sm:$0x11]
  %v157 = vld [vmem:[%s0 + $0x3e8] sm:$0x11]
  %v158 = vld [vmem:[%s0 + $0x3f0] sm:$0x11]
  %v159 = vld [vmem:[%s0 + $0x3f8] sm:$0x11]
  %v162 = vunpack.c.l.b16 %v30
  %v163 = vunpack.c.l.b16 %v31
  %v164 = vpack.c.b16 %v163, %v162
  %v293 = vunpack.c.l.b16 %v32
  %v294 = vunpack.c.h.b16 %v32
  %v295 = vunpack.c.l.b16 %v33
  %v296 = vunpack.c.h.b16 %v33
  %v297 = vunpack.c.l.b16 %v34
  %v298 = vunpack.c.h.b16 %v34
  %v299 = vunpack.c.l.b16 %v35
  %v300 = vunpack.c.h.b16 %v35
  %v301 = vunpack.c.l.b16 %v36
  %v302 = vunpack.c.h.b16 %v36
  %v303 = vunpack.c.l.b16 %v37
  %v304 = vunpack.c.h.b16 %v37
  %v305 = vunpack.c.l.b16 %v38
  %v306 = vunpack.c.h.b16 %v38
  %v307 = vunpack.c.l.b16 %v39
  %v308 = vunpack.c.h.b16 %v39
  %v309 = vunpack.c.l.b16 %v40
  %v310 = vunpack.c.h.b16 %v40
  %v311 = vunpack.c.l.b16 %v41
  %v312 = vunpack.c.h.b16 %v41
  %v313 = vunpack.c.l.b16 %v42
  %v314 = vunpack.c.h.b16 %v42
  %v315 = vunpack.c.l.b16 %v43
  %v316 = vunpack.c.h.b16 %v43
  %v317 = vunpack.c.l.b16 %v44
  %v318 = vunpack.c.h.b16 %v44
  %v319 = vunpack.c.l.b16 %v45
  %v320 = vunpack.c.h.b16 %v45
  %v321 = vunpack.c.l.b16 %v46
  %v322 = vunpack.c.h.b16 %v46
  %v323 = vunpack.c.l.b16 %v47
  %v324 = vunpack.c.h.b16 %v47
  %v325 = vunpack.c.l.b16 %v48
  %v326 = vunpack.c.h.b16 %v48
  %v327 = vunpack.c.l.b16 %v49
  %v328 = vunpack.c.h.b16 %v49
  %v329 = vunpack.c.l.b16 %v50
  %v330 = vunpack.c.h.b16 %v50
  %v331 = vunpack.c.l.b16 %v51
  %v332 = vunpack.c.h.b16 %v51
  %v333 = vunpack.c.l.b16 %v52
  %v334 = vunpack.c.h.b16 %v52
  %v335 = vunpack.c.l.b16 %v53
  %v336 = vunpack.c.h.b16 %v53
  %v337 = vunpack.c.l.b16 %v54
  %v338 = vunpack.c.h.b16 %v54
  %v339 = vunpack.c.l.b16 %v55
  %v340 = vunpack.c.h.b16 %v55
  %v341 = vunpack.c.l.b16 %v56
  %v342 = vunpack.c.h.b16 %v56
  %v343 = vunpack.c.l.b16 %v57
  %v344 = vunpack.c.h.b16 %v57
  %v345 = vunpack.c.l.b16 %v58
  %v346 = vunpack.c.h.b16 %v58
  %v347 = vunpack.c.l.b16 %v59
  %v348 = vunpack.c.h.b16 %v59
  %v349 = vunpack.c.l.b16 %v60
  %v350 = vunpack.c.h.b16 %v60
  %v351 = vunpack.c.l.b16 %v61
  %v352 = vunpack.c.h.b16 %v61
  %v353 = vunpack.c.l.b16 %v62
  %v354 = vunpack.c.h.b16 %v62
  %v355 = vunpack.c.l.b16 %v63
  %v356 = vunpack.c.h.b16 %v63
  %v357 = vunpack.c.l.b16 %v64
  %v358 = vunpack.c.h.b16 %v64
  %v359 = vunpack.c.l.b16 %v65
  %v360 = vunpack.c.h.b16 %v65
  %v361 = vunpack.c.l.b16 %v66
  %v362 = vunpack.c.h.b16 %v66
  %v363 = vunpack.c.l.b16 %v67
  %v364 = vunpack.c.h.b16 %v67
  %v365 = vunpack.c.l.b16 %v68
  %v366 = vunpack.c.h.b16 %v68
  %v367 = vunpack.c.l.b16 %v69
  %v368 = vunpack.c.h.b16 %v69
  %v369 = vunpack.c.l.b16 %v70
  %v370 = vunpack.c.h.b16 %v70
  %v371 = vunpack.c.l.b16 %v71
  %v372 = vunpack.c.h.b16 %v71
  %v373 = vunpack.c.l.b16 %v72
  %v374 = vunpack.c.h.b16 %v72
  %v375 = vunpack.c.l.b16 %v73
  %v376 = vunpack.c.h.b16 %v73
  %v377 = vunpack.c.l.b16 %v74
  %v378 = vunpack.c.h.b16 %v74
  %v379 = vunpack.c.l.b16 %v75
  %v380 = vunpack.c.h.b16 %v75
  %v381 = vunpack.c.l.b16 %v76
  %v382 = vunpack.c.h.b16 %v76
  %v383 = vunpack.c.l.b16 %v77
  %v384 = vunpack.c.h.b16 %v77
  %v385 = vunpack.c.l.b16 %v78
  %v386 = vunpack.c.h.b16 %v78
  %v387 = vunpack.c.l.b16 %v79
  %v388 = vunpack.c.h.b16 %v79
  %v389 = vunpack.c.l.b16 %v80
  %v390 = vunpack.c.h.b16 %v80
  %v391 = vunpack.c.l.b16 %v81
  %v392 = vunpack.c.h.b16 %v81
  %v393 = vunpack.c.l.b16 %v82
  %v394 = vunpack.c.h.b16 %v82
  %v395 = vunpack.c.l.b16 %v83
  %v396 = vunpack.c.h.b16 %v83
  %v397 = vunpack.c.l.b16 %v84
  %v398 = vunpack.c.h.b16 %v84
  %v399 = vunpack.c.l.b16 %v85
  %v400 = vunpack.c.h.b16 %v85
  %v401 = vunpack.c.l.b16 %v86
  %v402 = vunpack.c.h.b16 %v86
  %v403 = vunpack.c.l.b16 %v87
  %v404 = vunpack.c.h.b16 %v87
  %v405 = vunpack.c.l.b16 %v88
  %v406 = vunpack.c.h.b16 %v88
  %v407 = vunpack.c.l.b16 %v89
  %v408 = vunpack.c.h.b16 %v89
  %v409 = vunpack.c.l.b16 %v90
  %v410 = vunpack.c.h.b16 %v90
  %v411 = vunpack.c.l.b16 %v91
  %v412 = vunpack.c.h.b16 %v91
  %v413 = vunpack.c.l.b16 %v92
  %v414 = vunpack.c.h.b16 %v92
  %v415 = vunpack.c.l.b16 %v93
  %v416 = vunpack.c.h.b16 %v93
  %v417 = vunpack.c.l.b16 %v94
  %v418 = vunpack.c.h.b16 %v94
  %v419 = vunpack.c.l.b16 %v95
  %v420 = vunpack.c.h.b16 %v95
  %v421 = vunpack.c.l.b16 %v96
  %v422 = vunpack.c.h.b16 %v96
  %v423 = vunpack.c.l.b16 %v97
  %v424 = vunpack.c.h.b16 %v97
  %v425 = vunpack.c.l.b16 %v98
  %v426 = vunpack.c.h.b16 %v98
  %v427 = vunpack.c.l.b16 %v99
  %v428 = vunpack.c.h.b16 %v99
  %v429 = vunpack.c.l.b16 %v100
  %v430 = vunpack.c.h.b16 %v100
  %v431 = vunpack.c.l.b16 %v101
  %v432 = vunpack.c.h.b16 %v101
  %v433 = vunpack.c.l.b16 %v102
  %v434 = vunpack.c.h.b16 %v102
  %v435 = vunpack.c.l.b16 %v103
  %v436 = vunpack.c.h.b16 %v103
  %v437 = vunpack.c.l.b16 %v104
  %v438 = vunpack.c.h.b16 %v104
  %v439 = vunpack.c.l.b16 %v105
  %v440 = vunpack.c.h.b16 %v105
  %v441 = vunpack.c.l.b16 %v106
  %v442 = vunpack.c.h.b16 %v106
  %v443 = vunpack.c.l.b16 %v107
  %v444 = vunpack.c.h.b16 %v107
  %v445 = vunpack.c.l.b16 %v108
  %v446 = vunpack.c.h.b16 %v108
  %v447 = vunpack.c.l.b16 %v109
  %v448 = vunpack.c.h.b16 %v109
  %v449 = vunpack.c.l.b16 %v110
  %v450 = vunpack.c.h.b16 %v110
  %v451 = vunpack.c.l.b16 %v111
  %v452 = vunpack.c.h.b16 %v111
  %v453 = vunpack.c.l.b16 %v112
  %v454 = vunpack.c.h.b16 %v112
  %v455 = vunpack.c.l.b16 %v113
  %v456 = vunpack.c.h.b16 %v113
  %v457 = vunpack.c.l.b16 %v114
  %v458 = vunpack.c.h.b16 %v114
  %v459 = vunpack.c.l.b16 %v115
  %v460 = vunpack.c.h.b16 %v115
  %v461 = vunpack.c.l.b16 %v116
  %v462 = vunpack.c.h.b16 %v116
  %v463 = vunpack.c.l.b16 %v117
  %v464 = vunpack.c.h.b16 %v117
  %v465 = vunpack.c.l.b16 %v118
  %v466 = vunpack.c.h.b16 %v118
  %v467 = vunpack.c.l.b16 %v119
  %v468 = vunpack.c.h.b16 %v119
  %v469 = vunpack.c.l.b16 %v120
  %v470 = vunpack.c.h.b16 %v120
  %v471 = vunpack.c.l.b16 %v121
  %v472 = vunpack.c.h.b16 %v121
  %v473 = vunpack.c.l.b16 %v122
  %v474 = vunpack.c.h.b16 %v122
  %v475 = vunpack.c.l.b16 %v123
  %v476 = vunpack.c.h.b16 %v123
  %v477 = vunpack.c.l.b16 %v124
  %v478 = vunpack.c.h.b16 %v124
  %v479 = vunpack.c.l.b16 %v125
  %v480 = vunpack.c.h.b16 %v125
  %v481 = vunpack.c.l.b16 %v126
  %v482 = vunpack.c.h.b16 %v126
  %v483 = vunpack.c.l.b16 %v127
  %v484 = vunpack.c.h.b16 %v127
  %v485 = vunpack.c.l.b16 %v128
  %v486 = vunpack.c.h.b16 %v128
  %v487 = vunpack.c.l.b16 %v129
  %v488 = vunpack.c.h.b16 %v129
  %v489 = vunpack.c.l.b16 %v130
  %v490 = vunpack.c.h.b16 %v130
  %v491 = vunpack.c.l.b16 %v131
  %v492 = vunpack.c.h.b16 %v131
  %v493 = vunpack.c.l.b16 %v132
  %v494 = vunpack.c.h.b16 %v132
  %v495 = vunpack.c.l.b16 %v133
  %v496 = vunpack.c.h.b16 %v133
  %v497 = vunpack.c.l.b16 %v134
  %v498 = vunpack.c.h.b16 %v134
  %v499 = vunpack.c.l.b16 %v135
  %v500 = vunpack.c.h.b16 %v135
  %v501 = vunpack.c.l.b16 %v136
  %v502 = vunpack.c.h.b16 %v136
  %v503 = vunpack.c.l.b16 %v137
  %v504 = vunpack.c.h.b16 %v137
  %v505 = vunpack.c.l.b16 %v138
  %v506 = vunpack.c.h.b16 %v138
  %v507 = vunpack.c.l.b16 %v139
  %v508 = vunpack.c.h.b16 %v139
  %v509 = vunpack.c.l.b16 %v140
  %v510 = vunpack.c.h.b16 %v140
  %v511 = vunpack.c.l.b16 %v141
  %v512 = vunpack.c.h.b16 %v141
  %v513 = vunpack.c.l.b16 %v142
  %v514 = vunpack.c.h.b16 %v142
  %v515 = vunpack.c.l.b16 %v143
  %v516 = vunpack.c.h.b16 %v143
  %v517 = vunpack.c.l.b16 %v144
  %v518 = vunpack.c.h.b16 %v144
  %v519 = vunpack.c.l.b16 %v145
  %v520 = vunpack.c.h.b16 %v145
  %v521 = vunpack.c.l.b16 %v146
  %v522 = vunpack.c.h.b16 %v146
  %v523 = vunpack.c.l.b16 %v147
  %v524 = vunpack.c.h.b16 %v147
  %v525 = vunpack.c.l.b16 %v148
  %v526 = vunpack.c.h.b16 %v148
  %v527 = vunpack.c.l.b16 %v149
  %v528 = vunpack.c.h.b16 %v149
  %v529 = vunpack.c.l.b16 %v150
  %v530 = vunpack.c.h.b16 %v150
  %v531 = vunpack.c.l.b16 %v151
  %v532 = vunpack.c.h.b16 %v151
  %v533 = vunpack.c.l.b16 %v152
  %v534 = vunpack.c.h.b16 %v152
  %v535 = vunpack.c.l.b16 %v153
  %v536 = vunpack.c.h.b16 %v153
  %v537 = vunpack.c.l.b16 %v154
  %v538 = vunpack.c.h.b16 %v154
  %v539 = vunpack.c.l.b16 %v155
  %v540 = vunpack.c.h.b16 %v155
  %v541 = vunpack.c.l.b16 %v156
  %v542 = vunpack.c.h.b16 %v156
  %v543 = vunpack.c.l.b16 %v157
  %v544 = vunpack.c.h.b16 %v157
  %v545 = vunpack.c.l.b16 %v158
  %v546 = vunpack.c.h.b16 %v158
  %v547 = vunpack.c.l.b16 %v159
  %v548 = vunpack.c.h.b16 %v159
  %v549 = vpack.c.b16 %v357, %v293
  %v550 = vpack.c.b16 %v358, %v294
  %v551 = vpack.c.b16 %v359, %v295
  %v552 = vpack.c.b16 %v360, %v296
  %v553 = vpack.c.b16 %v361, %v297
  %v554 = vpack.c.b16 %v362, %v298
  %v555 = vpack.c.b16 %v363, %v299
  %v556 = vpack.c.b16 %v364, %v300
  %v557 = vpack.c.b16 %v365, %v301
  %v558 = vpack.c.b16 %v366, %v302
  %v559 = vpack.c.b16 %v367, %v303
  %v560 = vpack.c.b16 %v368, %v304
  %v561 = vpack.c.b16 %v369, %v305
  %v562 = vpack.c.b16 %v370, %v306
  %v563 = vpack.c.b16 %v371, %v307
  %v564 = vpack.c.b16 %v372, %v308
  %v565 = vpack.c.b16 %v373, %v309
  %v566 = vpack.c.b16 %v374, %v310
  %v567 = vpack.c.b16 %v375, %v311
  %v568 = vpack.c.b16 %v376, %v312
  %v569 = vpack.c.b16 %v377, %v313
  %v570 = vpack.c.b16 %v378, %v314
  %v571 = vpack.c.b16 %v379, %v315
  %v572 = vpack.c.b16 %v380, %v316
  %v573 = vpack.c.b16 %v381, %v317
  %v574 = vpack.c.b16 %v382, %v318
  %v575 = vpack.c.b16 %v383, %v319
  %v576 = vpack.c.b16 %v384, %v320
  %v577 = vpack.c.b16 %v385, %v321
  %v578 = vpack.c.b16 %v386, %v322
  %v579 = vpack.c.b16 %v387, %v323
  %v580 = vpack.c.b16 %v388, %v324
  %v581 = vpack.c.b16 %v389, %v325
  %v582 = vpack.c.b16 %v390, %v326
  %v583 = vpack.c.b16 %v391, %v327
  %v584 = vpack.c.b16 %v392, %v328
  %v585 = vpack.c.b16 %v393, %v329
  %v586 = vpack.c.b16 %v394, %v330
  %v587 = vpack.c.b16 %v395, %v331
  %v588 = vpack.c.b16 %v396, %v332
  %v589 = vpack.c.b16 %v397, %v333
  %v590 = vpack.c.b16 %v398, %v334
  %v591 = vpack.c.b16 %v399, %v335
  %v592 = vpack.c.b16 %v400, %v336
  %v593 = vpack.c.b16 %v401, %v337
  %v594 = vpack.c.b16 %v402, %v338
  %v595 = vpack.c.b16 %v403, %v339
  %v596 = vpack.c.b16 %v404, %v340
  %v597 = vpack.c.b16 %v405, %v341
  %v598 = vpack.c.b16 %v406, %v342
  %v599 = vpack.c.b16 %v407, %v343
  %v600 = vpack.c.b16 %v408, %v344
  %v601 = vpack.c.b16 %v409, %v345
  %v602 = vpack.c.b16 %v410, %v346
  %v603 = vpack.c.b16 %v411, %v347
  %v604 = vpack.c.b16 %v412, %v348
  %v605 = vpack.c.b16 %v413, %v349
  %v606 = vpack.c.b16 %v414, %v350
  %v607 = vpack.c.b16 %v415, %v351
  %v608 = vpack.c.b16 %v416, %v352
  %v609 = vpack.c.b16 %v417, %v353
  %v610 = vpack.c.b16 %v418, %v354
  %v611 = vpack.c.b16 %v419, %v355
  %v612 = vpack.c.b16 %v420, %v356
  %v613 = vpack.c.b16 %v485, %v421
  %v614 = vpack.c.b16 %v486, %v422
  %v615 = vpack.c.b16 %v487, %v423
  %v616 = vpack.c.b16 %v488, %v424
  %v617 = vpack.c.b16 %v489, %v425
  %v618 = vpack.c.b16 %v490, %v426
  %v619 = vpack.c.b16 %v491, %v427
  %v620 = vpack.c.b16 %v492, %v428
  %v621 = vpack.c.b16 %v493, %v429
  %v622 = vpack.c.b16 %v494, %v430
  %v623 = vpack.c.b16 %v495, %v431
  %v624 = vpack.c.b16 %v496, %v432
  %v625 = vpack.c.b16 %v497, %v433
  %v626 = vpack.c.b16 %v498, %v434
  %v627 = vpack.c.b16 %v499, %v435
  %v628 = vpack.c.b16 %v500, %v436
  %v629 = vpack.c.b16 %v501, %v437
  %v630 = vpack.c.b16 %v502, %v438
  %v631 = vpack.c.b16 %v503, %v439
  %v632 = vpack.c.b16 %v504, %v440
  %v633 = vpack.c.b16 %v505, %v441
  %v634 = vpack.c.b16 %v506, %v442
  %v635 = vpack.c.b16 %v507, %v443
  %v636 = vpack.c.b16 %v508, %v444
  %v637 = vpack.c.b16 %v509, %v445
  %v638 = vpack.c.b16 %v510, %v446
  %v639 = vpack.c.b16 %v511, %v447
  %v640 = vpack.c.b16 %v512, %v448
  %v641 = vpack.c.b16 %v513, %v449
  %v642 = vpack.c.b16 %v514, %v450
  %v643 = vpack.c.b16 %v515, %v451
  %v644 = vpack.c.b16 %v516, %v452
  %v645 = vpack.c.b16 %v517, %v453
  %v646 = vpack.c.b16 %v518, %v454
  %v647 = vpack.c.b16 %v519, %v455
  %v648 = vpack.c.b16 %v520, %v456
  %v649 = vpack.c.b16 %v521, %v457
  %v650 = vpack.c.b16 %v522, %v458
  %v651 = vpack.c.b16 %v523, %v459
  %v652 = vpack.c.b16 %v524, %v460
  %v653 = vpack.c.b16 %v525, %v461
  %v654 = vpack.c.b16 %v526, %v462
  %v655 = vpack.c.b16 %v527, %v463
  %v656 = vpack.c.b16 %v528, %v464
  %v657 = vpack.c.b16 %v529, %v465
  %v658 = vpack.c.b16 %v530, %v466
  %v659 = vpack.c.b16 %v531, %v467
  %v660 = vpack.c.b16 %v532, %v468
  %v661 = vpack.c.b16 %v533, %v469
  %v662 = vpack.c.b16 %v534, %v470
  %v663 = vpack.c.b16 %v535, %v471
  %v664 = vpack.c.b16 %v536, %v472
  %v665 = vpack.c.b16 %v537, %v473
  %v666 = vpack.c.b16 %v538, %v474
  %v667 = vpack.c.b16 %v539, %v475
  %v668 = vpack.c.b16 %v540, %v476
  %v669 = vpack.c.b16 %v541, %v477
  %v670 = vpack.c.b16 %v542, %v478
  %v671 = vpack.c.b16 %v543, %v479
  %v672 = vpack.c.b16 %v544, %v480
  %v673 = vpack.c.b16 %v545, %v481
  %v674 = vpack.c.b16 %v546, %v482
  %v675 = vpack.c.b16 %v547, %v483
  %v676 = vpack.c.b16 %v548, %v484
  %vm741 = vcmask 203776
  %v743 = vsel %vm741, %v164, 0
  %vm745 = vcmask 1043456
  %vm746 = vcmask 1044480
  %v747 = vsel %vm745, 4294967295, 65535
  %v748 = vsel %vm746, %v747, 0
  %v750 = vand.u32 %v613, %v748
  %v753 = vand.u32 %v614, %v748
  %v756 = vand.u32 %v615, %v748
  %v759 = vand.u32 %v616, %v748
  %v762 = vand.u32 %v617, %v748
  %v765 = vand.u32 %v618, %v748
  %v768 = vand.u32 %v619, %v748
  %v771 = vand.u32 %v620, %v748
  %v774 = vand.u32 %v621, %v748
  %v777 = vand.u32 %v622, %v748
  %v780 = vand.u32 %v623, %v748
  %v783 = vand.u32 %v624, %v748
  %v786 = vand.u32 %v625, %v748
  %v789 = vand.u32 %v626, %v748
  %v792 = vand.u32 %v627, %v748
  %v795 = vand.u32 %v628, %v748
  %v798 = vand.u32 %v629, %v748
  %v801 = vand.u32 %v630, %v748
  %v804 = vand.u32 %v631, %v748
  %v807 = vand.u32 %v632, %v748
  %v810 = vand.u32 %v633, %v748
  %v813 = vand.u32 %v634, %v748
  %v816 = vand.u32 %v635, %v748
  %v819 = vand.u32 %v636, %v748
  %v822 = vand.u32 %v637, %v748
  %v825 = vand.u32 %v638, %v748
  %v828 = vand.u32 %v639, %v748
  %v831 = vand.u32 %v640, %v748
  %v834 = vand.u32 %v641, %v748
  %v837 = vand.u32 %v642, %v748
  %v840 = vand.u32 %v643, %v748
  %v843 = vand.u32 %v644, %v748
  %v846 = vand.u32 %v645, %v748
  %v849 = vand.u32 %v646, %v748
  %v852 = vand.u32 %v647, %v748
  %v855 = vand.u32 %v648, %v748
  %v858 = vand.u32 %v649, %v748
  %v861 = vand.u32 %v650, %v748
  %v864 = vand.u32 %v651, %v748
  %v867 = vand.u32 %v652, %v748
  %v870 = vand.u32 %v653, %v748
  %v873 = vand.u32 %v654, %v748
  %v876 = vand.u32 %v655, %v748
  %v879 = vand.u32 %v656, %v748
  %v882 = vand.u32 %v657, %v748
  %v885 = vand.u32 %v658, %v748
  %v888 = vand.u32 %v659, %v748
  %v891 = vand.u32 %v660, %v748
  %v894 = vand.u32 %v661, %v748
  %v897 = vand.u32 %v662, %v748
  %v900 = vand.u32 %v663, %v748
  %v903 = vand.u32 %v664, %v748
  %v906 = vand.u32 %v665, %v748
  %v909 = vand.u32 %v666, %v748
  %v912 = vand.u32 %v667, %v748
  %v915 = vand.u32 %v668, %v748
  %v918 = vand.u32 %v669, %v748
  %v921 = vand.u32 %v670, %v748
  %v924 = vand.u32 %v671, %v748
  %v927 = vand.u32 %v672, %v748
  %v930 = vand.u32 %v673, %v748
  %v933 = vand.u32 %v674, %v748
  %v936 = vand.u32 %v675, %v748
  %v939 = vand.u32 %v676, %v748
  %941 = vmatpush.bf16.msra.mxu0 0
  %942 = vmatpush.bf16.msra.mxu0 0
  %943 = vmatpush.bf16.msra.mxu0 0
  %944 = vmatpush.bf16.msra.mxu0 0
  %945 = vmatpush.bf16.msra.mxu0 0
  %946 = vmatpush.bf16.msra.mxu0 0
  %947 = vmatpush.bf16.msra.mxu0 %v750
  %948 = vmatpush.bf16.msra.mxu0 %v549
  %949 = vmatmul.bf16.gmra.mxu0 %v743
  %v950 = vpop.f32.mrf.mxu0
  %v951 = vadd.f32 0.0, %v950
  %v952 = vpop.f32.mrf.mxu0
  %v953 = vadd.f32 0.0, %v952
  %954 = vdwg.mxu0
  %955 = vmatpush.bf16.msra.mxu0 0
  %956 = vmatpush.bf16.msra.mxu0 0
  %957 = vmatpush.bf16.msra.mxu0 0
  %958 = vmatpush.bf16.msra.mxu0 0
  %959 = vmatpush.bf16.msra.mxu0 0
  %960 = vmatpush.bf16.msra.mxu0 0
  %961 = vmatpush.bf16.msra.mxu0 %v753
  %962 = vmatpush.bf16.msra.mxu0 %v550
  %963 = vmatmul.bf16.gmra.mxu0 %v743
  %v964 = vpop.f32.mrf.mxu0
  %v965 = vadd.f32 0.0, %v964
  %v966 = vpop.f32.mrf.mxu0
  %v967 = vadd.f32 0.0, %v966
  %968 = vdwg.mxu0
  %969 = vmatpush.bf16.msra.mxu0 0
  %970 = vmatpush.bf16.msra.mxu0 0
  %971 = vmatpush.bf16.msra.mxu0 0
  %972 = vmatpush.bf16.msra.mxu0 0
  %973 = vmatpush.bf16.msra.mxu0 0
  %974 = vmatpush.bf16.msra.mxu0 0
  %975 = vmatpush.bf16.msra.mxu0 %v756
  %976 = vmatpush.bf16.msra.mxu0 %v551
  %977 = vmatmul.bf16.gmra.mxu0 %v743
  %v978 = vpop.f32.mrf.mxu0
  %v979 = vadd.f32 0.0, %v978
  %v980 = vpop.f32.mrf.mxu0
  %v981 = vadd.f32 0.0, %v980
  %982 = vdwg.mxu0
  %983 = vmatpush.bf16.msra.mxu0 0
  %984 = vmatpush.bf16.msra.mxu0 0
  %985 = vmatpush.bf16.msra.mxu0 0
  %986 = vmatpush.bf16.msra.mxu0 0
  %987 = vmatpush.bf16.msra.mxu0 0
  %988 = vmatpush.bf16.msra.mxu0 0
  %989 = vmatpush.bf16.msra.mxu0 %v759
  %990 = vmatpush.bf16.msra.mxu0 %v552
  %991 = vmatmul.bf16.gmra.mxu0 %v743
  %v992 = vpop.f32.mrf.mxu0
  %v993 = vadd.f32 0.0, %v992
  %v994 = vpop.f32.mrf.mxu0
  %v995 = vadd.f32 0.0, %v994
  %996 = vdwg.mxu0
  %997 = vmatpush.bf16.msra.mxu0 0
  %998 = vmatpush.bf16.msra.mxu0 0
  %999 = vmatpush.bf16.msra.mxu0 0
  %1000 = vmatpush.bf16.msra.mxu0 0
  %1001 = vmatpush.bf16.msra.mxu0 0
  %1002 = vmatpush.bf16.msra.mxu0 0
  %1003 = vmatpush.bf16.msra.mxu0 %v762
  %1004 = vmatpush.bf16.msra.mxu0 %v553
  %1005 = vmatmul.bf16.gmra.mxu0 %v743
  %v1006 = vpop.f32.mrf.mxu0
  %v1007 = vadd.f32 0.0, %v1006
  %v1008 = vpop.f32.mrf.mxu0
  %v1009 = vadd.f32 0.0, %v1008
  %1010 = vdwg.mxu0
  %1011 = vmatpush.bf16.msra.mxu0 0
  %1012 = vmatpush.bf16.msra.mxu0 0
  %1013 = vmatpush.bf16.msra.mxu0 0
  %1014 = vmatpush.bf16.msra.mxu0 0
  %1015 = vmatpush.bf16.msra.mxu0 0
  %1016 = vmatpush.bf16.msra.mxu0 0
  %1017 = vmatpush.bf16.msra.mxu0 %v765
  %1018 = vmatpush.bf16.msra.mxu0 %v554
  %1019 = vmatmul.bf16.gmra.mxu0 %v743
  %v1020 = vpop.f32.mrf.mxu0
  %v1021 = vadd.f32 0.0, %v1020
  %v1022 = vpop.f32.mrf.mxu0
  %v1023 = vadd.f32 0.0, %v1022
  %1024 = vdwg.mxu0
  %1025 = vmatpush.bf16.msra.mxu0 0
  %1026 = vmatpush.bf16.msra.mxu0 0
  %1027 = vmatpush.bf16.msra.mxu0 0
  %1028 = vmatpush.bf16.msra.mxu0 0
  %1029 = vmatpush.bf16.msra.mxu0 0
  %1030 = vmatpush.bf16.msra.mxu0 0
  %1031 = vmatpush.bf16.msra.mxu0 %v768
  %1032 = vmatpush.bf16.msra.mxu0 %v555
  %1033 = vmatmul.bf16.gmra.mxu0 %v743
  %v1034 = vpop.f32.mrf.mxu0
  %v1035 = vadd.f32 0.0, %v1034
  %v1036 = vpop.f32.mrf.mxu0
  %v1037 = vadd.f32 0.0, %v1036
  %1038 = vdwg.mxu0
  %1039 = vmatpush.bf16.msra.mxu0 0
  %1040 = vmatpush.bf16.msra.mxu0 0
  %1041 = vmatpush.bf16.msra.mxu0 0
  %1042 = vmatpush.bf16.msra.mxu0 0
  %1043 = vmatpush.bf16.msra.mxu0 0
  %1044 = vmatpush.bf16.msra.mxu0 0
  %1045 = vmatpush.bf16.msra.mxu0 %v771
  %1046 = vmatpush.bf16.msra.mxu0 %v556
  %1047 = vmatmul.bf16.gmra.mxu0 %v743
  %v1048 = vpop.f32.mrf.mxu0
  %v1049 = vadd.f32 0.0, %v1048
  %v1050 = vpop.f32.mrf.mxu0
  %v1051 = vadd.f32 0.0, %v1050
  %1052 = vdwg.mxu0
  %1053 = vmatpush.bf16.msra.mxu0 0
  %1054 = vmatpush.bf16.msra.mxu0 0
  %1055 = vmatpush.bf16.msra.mxu0 0
  %1056 = vmatpush.bf16.msra.mxu0 0
  %1057 = vmatpush.bf16.msra.mxu0 0
  %1058 = vmatpush.bf16.msra.mxu0 0
  %1059 = vmatpush.bf16.msra.mxu0 %v774
  %1060 = vmatpush.bf16.msra.mxu0 %v557
  %1061 = vmatmul.bf16.gmra.mxu0 %v743
  %v1062 = vpop.f32.mrf.mxu0
  %v1063 = vadd.f32 0.0, %v1062
  %v1064 = vpop.f32.mrf.mxu0
  %v1065 = vadd.f32 0.0, %v1064
  %1066 = vdwg.mxu0
  %1067 = vmatpush.bf16.msra.mxu0 0
  %1068 = vmatpush.bf16.msra.mxu0 0
  %1069 = vmatpush.bf16.msra.mxu0 0
  %1070 = vmatpush.bf16.msra.mxu0 0
  %1071 = vmatpush.bf16.msra.mxu0 0
  %1072 = vmatpush.bf16.msra.mxu0 0
  %1073 = vmatpush.bf16.msra.mxu0 %v777
  %1074 = vmatpush.bf16.msra.mxu0 %v558
  %1075 = vmatmul.bf16.gmra.mxu0 %v743
  %v1076 = vpop.f32.mrf.mxu0
  %v1077 = vadd.f32 0.0, %v1076
  %v1078 = vpop.f32.mrf.mxu0
  %v1079 = vadd.f32 0.0, %v1078
  %1080 = vdwg.mxu0
  %1081 = vmatpush.bf16.msra.mxu0 0
  %1082 = vmatpush.bf16.msra.mxu0 0
  %1083 = vmatpush.bf16.msra.mxu0 0
  %1084 = vmatpush.bf16.msra.mxu0 0
  %1085 = vmatpush.bf16.msra.mxu0 0
  %1086 = vmatpush.bf16.msra.mxu0 0
  %1087 = vmatpush.bf16.msra.mxu0 %v780
  %1088 = vmatpush.bf16.msra.mxu0 %v559
  %1089 = vmatmul.bf16.gmra.mxu0 %v743
  %v1090 = vpop.f32.mrf.mxu0
  %v1091 = vadd.f32 0.0, %v1090
  %v1092 = vpop.f32.mrf.mxu0
  %v1093 = vadd.f32 0.0, %v1092
  %1094 = vdwg.mxu0
  %1095 = vmatpush.bf16.msra.mxu0 0
  %1096 = vmatpush.bf16.msra.mxu0 0
  %1097 = vmatpush.bf16.msra.mxu0 0
  %1098 = vmatpush.bf16.msra.mxu0 0
  %1099 = vmatpush.bf16.msra.mxu0 0
  %1100 = vmatpush.bf16.msra.mxu0 0
  %1101 = vmatpush.bf16.msra.mxu0 %v783
  %1102 = vmatpush.bf16.msra.mxu0 %v560
  %1103 = vmatmul.bf16.gmra.mxu0 %v743
  %v1104 = vpop.f32.mrf.mxu0
  %v1105 = vadd.f32 0.0, %v1104
  %v1106 = vpop.f32.mrf.mxu0
  %v1107 = vadd.f32 0.0, %v1106
  %1108 = vdwg.mxu0
  %1109 = vmatpush.bf16.msra.mxu0 0
  %1110 = vmatpush.bf16.msra.mxu0 0
  %1111 = vmatpush.bf16.msra.mxu0 0
  %1112 = vmatpush.bf16.msra.mxu0 0
  %1113 = vmatpush.bf16.msra.mxu0 0
  %1114 = vmatpush.bf16.msra.mxu0 0
  %1115 = vmatpush.bf16.msra.mxu0 %v786
  %1116 = vmatpush.bf16.msra.mxu0 %v561
  %1117 = vmatmul.bf16.gmra.mxu0 %v743
  %v1118 = vpop.f32.mrf.mxu0
  %v1119 = vadd.f32 0.0, %v1118
  %v1120 = vpop.f32.mrf.mxu0
  %v1121 = vadd.f32 0.0, %v1120
  %1122 = vdwg.mxu0
  %1123 = vmatpush.bf16.msra.mxu0 0
  %1124 = vmatpush.bf16.msra.mxu0 0
  %1125 = vmatpush.bf16.msra.mxu0 0
  %1126 = vmatpush.bf16.msra.mxu0 0
  %1127 = vmatpush.bf16.msra.mxu0 0
  %1128 = vmatpush.bf16.msra.mxu0 0
  %1129 = vmatpush.bf16.msra.mxu0 %v789
  %1130 = vmatpush.bf16.msra.mxu0 %v562
  %1131 = vmatmul.bf16.gmra.mxu0 %v743
  %v1132 = vpop.f32.mrf.mxu0
  %v1133 = vadd.f32 0.0, %v1132
  %v1134 = vpop.f32.mrf.mxu0
  %v1135 = vadd.f32 0.0, %v1134
  %1136 = vdwg.mxu0
  %1137 = vmatpush.bf16.msra.mxu0 0
  %1138 = vmatpush.bf16.msra.mxu0 0
  %1139 = vmatpush.bf16.msra.mxu0 0
  %1140 = vmatpush.bf16.msra.mxu0 0
  %1141 = vmatpush.bf16.msra.mxu0 0
  %1142 = vmatpush.bf16.msra.mxu0 0
  %1143 = vmatpush.bf16.msra.mxu0 %v792
  %1144 = vmatpush.bf16.msra.mxu0 %v563
  %1145 = vmatmul.bf16.gmra.mxu0 %v743
  %v1146 = vpop.f32.mrf.mxu0
  %v1147 = vadd.f32 0.0, %v1146
  %v1148 = vpop.f32.mrf.mxu0
  %v1149 = vadd.f32 0.0, %v1148
  %1150 = vdwg.mxu0
  %1151 = vmatpush.bf16.msra.mxu0 0
  %1152 = vmatpush.bf16.msra.mxu0 0
  %1153 = vmatpush.bf16.msra.mxu0 0
  %1154 = vmatpush.bf16.msra.mxu0 0
  %1155 = vmatpush.bf16.msra.mxu0 0
  %1156 = vmatpush.bf16.msra.mxu0 0
  %1157 = vmatpush.bf16.msra.mxu0 %v795
  %1158 = vmatpush.bf16.msra.mxu0 %v564
  %1159 = vmatmul.bf16.gmra.mxu0 %v743
  %v1160 = vpop.f32.mrf.mxu0
  %v1161 = vadd.f32 0.0, %v1160
  %v1162 = vpop.f32.mrf.mxu0
  %v1163 = vadd.f32 0.0, %v1162
  %1164 = vdwg.mxu0
  %1165 = vmatpush.bf16.msra.mxu0 0
  %1166 = vmatpush.bf16.msra.mxu0 0
  %1167 = vmatpush.bf16.msra.mxu0 0
  %1168 = vmatpush.bf16.msra.mxu0 0
  %1169 = vmatpush.bf16.msra.mxu0 0
  %1170 = vmatpush.bf16.msra.mxu0 0
  %1171 = vmatpush.bf16.msra.mxu0 %v798
  %1172 = vmatpush.bf16.msra.mxu0 %v565
  %1173 = vmatmul.bf16.gmra.mxu0 %v743
  %v1174 = vpop.f32.mrf.mxu0
  %v1175 = vadd.f32 0.0, %v1174
  %v1176 = vpop.f32.mrf.mxu0
  %v1177 = vadd.f32 0.0, %v1176
  %1178 = vdwg.mxu0
  %1179 = vmatpush.bf16.msra.mxu0 0
  %1180 = vmatpush.bf16.msra.mxu0 0
  %1181 = vmatpush.bf16.msra.mxu0 0
  %1182 = vmatpush.bf16.msra.mxu0 0
  %1183 = vmatpush.bf16.msra.mxu0 0
  %1184 = vmatpush.bf16.msra.mxu0 0
  %1185 = vmatpush.bf16.msra.mxu0 %v801
  %1186 = vmatpush.bf16.msra.mxu0 %v566
  %1187 = vmatmul.bf16.gmra.mxu0 %v743
  %v1188 = vpop.f32.mrf.mxu0
  %v1189 = vadd.f32 0.0, %v1188
  %v1190 = vpop.f32.mrf.mxu0
  %v1191 = vadd.f32 0.0, %v1190
  %1192 = vdwg.mxu0
  %1193 = vmatpush.bf16.msra.mxu0 0
  %1194 = vmatpush.bf16.msra.mxu0 0
  %1195 = vmatpush.bf16.msra.mxu0 0
  %1196 = vmatpush.bf16.msra.mxu0 0
  %1197 = vmatpush.bf16.msra.mxu0 0
  %1198 = vmatpush.bf16.msra.mxu0 0
  %1199 = vmatpush.bf16.msra.mxu0 %v804
  %1200 = vmatpush.bf16.msra.mxu0 %v567
  %1201 = vmatmul.bf16.gmra.mxu0 %v743
  %v1202 = vpop.f32.mrf.mxu0
  %v1203 = vadd.f32 0.0, %v1202
  %v1204 = vpop.f32.mrf.mxu0
  %v1205 = vadd.f32 0.0, %v1204
  %1206 = vdwg.mxu0
  %1207 = vmatpush.bf16.msra.mxu0 0
  %1208 = vmatpush.bf16.msra.mxu0 0
  %1209 = vmatpush.bf16.msra.mxu0 0
  %1210 = vmatpush.bf16.msra.mxu0 0
  %1211 = vmatpush.bf16.msra.mxu0 0
  %1212 = vmatpush.bf16.msra.mxu0 0
  %1213 = vmatpush.bf16.msra.mxu0 %v807
  %1214 = vmatpush.bf16.msra.mxu0 %v568
  %1215 = vmatmul.bf16.gmra.mxu0 %v743
  %v1216 = vpop.f32.mrf.mxu0
  %v1217 = vadd.f32 0.0, %v1216
  %v1218 = vpop.f32.mrf.mxu0
  %v1219 = vadd.f32 0.0, %v1218
  %1220 = vdwg.mxu0
  %1221 = vmatpush.bf16.msra.mxu0 0
  %1222 = vmatpush.bf16.msra.mxu0 0
  %1223 = vmatpush.bf16.msra.mxu0 0
  %1224 = vmatpush.bf16.msra.mxu0 0
  %1225 = vmatpush.bf16.msra.mxu0 0
  %1226 = vmatpush.bf16.msra.mxu0 0
  %1227 = vmatpush.bf16.msra.mxu0 %v810
  %1228 = vmatpush.bf16.msra.mxu0 %v569
  %1229 = vmatmul.bf16.gmra.mxu0 %v743
  %v1230 = vpop.f32.mrf.mxu0
  %v1231 = vadd.f32 0.0, %v1230
  %v1232 = vpop.f32.mrf.mxu0
  %v1233 = vadd.f32 0.0, %v1232
  %1234 = vdwg.mxu0
  %1235 = vmatpush.bf16.msra.mxu0 0
  %1236 = vmatpush.bf16.msra.mxu0 0
  %1237 = vmatpush.bf16.msra.mxu0 0
  %1238 = vmatpush.bf16.msra.mxu0 0
  %1239 = vmatpush.bf16.msra.mxu0 0
  %1240 = vmatpush.bf16.msra.mxu0 0
  %1241 = vmatpush.bf16.msra.mxu0 %v813
  %1242 = vmatpush.bf16.msra.mxu0 %v570
  %1243 = vmatmul.bf16.gmra.mxu0 %v743
  %v1244 = vpop.f32.mrf.mxu0
  %v1245 = vadd.f32 0.0, %v1244
  %v1246 = vpop.f32.mrf.mxu0
  %v1247 = vadd.f32 0.0, %v1246
  %1248 = vdwg.mxu0
  %1249 = vmatpush.bf16.msra.mxu0 0
  %1250 = vmatpush.bf16.msra.mxu0 0
  %1251 = vmatpush.bf16.msra.mxu0 0
  %1252 = vmatpush.bf16.msra.mxu0 0
  %1253 = vmatpush.bf16.msra.mxu0 0
  %1254 = vmatpush.bf16.msra.mxu0 0
  %1255 = vmatpush.bf16.msra.mxu0 %v816
  %1256 = vmatpush.bf16.msra.mxu0 %v571
  %1257 = vmatmul.bf16.gmra.mxu0 %v743
  %v1258 = vpop.f32.mrf.mxu0
  %v1259 = vadd.f32 0.0, %v1258
  %v1260 = vpop.f32.mrf.mxu0
  %v1261 = vadd.f32 0.0, %v1260
  %1262 = vdwg.mxu0
  %1263 = vmatpush.bf16.msra.mxu0 0
  %1264 = vmatpush.bf16.msra.mxu0 0
  %1265 = vmatpush.bf16.msra.mxu0 0
  %1266 = vmatpush.bf16.msra.mxu0 0
  %1267 = vmatpush.bf16.msra.mxu0 0
  %1268 = vmatpush.bf16.msra.mxu0 0
  %1269 = vmatpush.bf16.msra.mxu0 %v819
  %1270 = vmatpush.bf16.msra.mxu0 %v572
  %1271 = vmatmul.bf16.gmra.mxu0 %v743
  %v1272 = vpop.f32.mrf.mxu0
  %v1273 = vadd.f32 0.0, %v1272
  %v1274 = vpop.f32.mrf.mxu0
  %v1275 = vadd.f32 0.0, %v1274
  %1276 = vdwg.mxu0
  %1277 = vmatpush.bf16.msra.mxu0 0
  %1278 = vmatpush.bf16.msra.mxu0 0
  %1279 = vmatpush.bf16.msra.mxu0 0
  %1280 = vmatpush.bf16.msra.mxu0 0
  %1281 = vmatpush.bf16.msra.mxu0 0
  %1282 = vmatpush.bf16.msra.mxu0 0
  %1283 = vmatpush.bf16.msra.mxu0 %v822
  %1284 = vmatpush.bf16.msra.mxu0 %v573
  %1285 = vmatmul.bf16.gmra.mxu0 %v743
  %v1286 = vpop.f32.mrf.mxu0
  %v1287 = vadd.f32 0.0, %v1286
  %v1288 = vpop.f32.mrf.mxu0
  %v1289 = vadd.f32 0.0, %v1288
  %1290 = vdwg.mxu0
  %1291 = vmatpush.bf16.msra.mxu0 0
  %1292 = vmatpush.bf16.msra.mxu0 0
  %1293 = vmatpush.bf16.msra.mxu0 0
  %1294 = vmatpush.bf16.msra.mxu0 0
  %1295 = vmatpush.bf16.msra.mxu0 0
  %1296 = vmatpush.bf16.msra.mxu0 0
  %1297 = vmatpush.bf16.msra.mxu0 %v825
  %1298 = vmatpush.bf16.msra.mxu0 %v574
  %1299 = vmatmul.bf16.gmra.mxu0 %v743
  %v1300 = vpop.f32.mrf.mxu0
  %v1301 = vadd.f32 0.0, %v1300
  %v1302 = vpop.f32.mrf.mxu0
  %v1303 = vadd.f32 0.0, %v1302
  %1304 = vdwg.mxu0
  %1305 = vmatpush.bf16.msra.mxu0 0
  %1306 = vmatpush.bf16.msra.mxu0 0
  %1307 = vmatpush.bf16.msra.mxu0 0
  %1308 = vmatpush.bf16.msra.mxu0 0
  %1309 = vmatpush.bf16.msra.mxu0 0
  %1310 = vmatpush.bf16.msra.mxu0 0
  %1311 = vmatpush.bf16.msra.mxu0 %v828
  %1312 = vmatpush.bf16.msra.mxu0 %v575
  %1313 = vmatmul.bf16.gmra.mxu0 %v743
  %v1314 = vpop.f32.mrf.mxu0
  %v1315 = vadd.f32 0.0, %v1314
  %v1316 = vpop.f32.mrf.mxu0
  %v1317 = vadd.f32 0.0, %v1316
  %1318 = vdwg.mxu0
  %1319 = vmatpush.bf16.msra.mxu0 0
  %1320 = vmatpush.bf16.msra.mxu0 0
  %1321 = vmatpush.bf16.msra.mxu0 0
  %1322 = vmatpush.bf16.msra.mxu0 0
  %1323 = vmatpush.bf16.msra.mxu0 0
  %1324 = vmatpush.bf16.msra.mxu0 0
  %1325 = vmatpush.bf16.msra.mxu0 %v831
  %1326 = vmatpush.bf16.msra.mxu0 %v576
  %1327 = vmatmul.bf16.gmra.mxu0 %v743
  %v1328 = vpop.f32.mrf.mxu0
  %v1329 = vadd.f32 0.0, %v1328
  %v1330 = vpop.f32.mrf.mxu0
  %v1331 = vadd.f32 0.0, %v1330
  %1332 = vdwg.mxu0
  %1333 = vmatpush.bf16.msra.mxu0 0
  %1334 = vmatpush.bf16.msra.mxu0 0
  %1335 = vmatpush.bf16.msra.mxu0 0
  %1336 = vmatpush.bf16.msra.mxu0 0
  %1337 = vmatpush.bf16.msra.mxu0 0
  %1338 = vmatpush.bf16.msra.mxu0 0
  %1339 = vmatpush.bf16.msra.mxu0 %v834
  %1340 = vmatpush.bf16.msra.mxu0 %v577
  %1341 = vmatmul.bf16.gmra.mxu0 %v743
  %v1342 = vpop.f32.mrf.mxu0
  %v1343 = vadd.f32 0.0, %v1342
  %v1344 = vpop.f32.mrf.mxu0
  %v1345 = vadd.f32 0.0, %v1344
  %1346 = vdwg.mxu0
  %1347 = vmatpush.bf16.msra.mxu0 0
  %1348 = vmatpush.bf16.msra.mxu0 0
  %1349 = vmatpush.bf16.msra.mxu0 0
  %1350 = vmatpush.bf16.msra.mxu0 0
  %1351 = vmatpush.bf16.msra.mxu0 0
  %1352 = vmatpush.bf16.msra.mxu0 0
  %1353 = vmatpush.bf16.msra.mxu0 %v837
  %1354 = vmatpush.bf16.msra.mxu0 %v578
  %1355 = vmatmul.bf16.gmra.mxu0 %v743
  %v1356 = vpop.f32.mrf.mxu0
  %v1357 = vadd.f32 0.0, %v1356
  %v1358 = vpop.f32.mrf.mxu0
  %v1359 = vadd.f32 0.0, %v1358
  %1360 = vdwg.mxu0
  %1361 = vmatpush.bf16.msra.mxu0 0
  %1362 = vmatpush.bf16.msra.mxu0 0
  %1363 = vmatpush.bf16.msra.mxu0 0
  %1364 = vmatpush.bf16.msra.mxu0 0
  %1365 = vmatpush.bf16.msra.mxu0 0
  %1366 = vmatpush.bf16.msra.mxu0 0
  %1367 = vmatpush.bf16.msra.mxu0 %v840
  %1368 = vmatpush.bf16.msra.mxu0 %v579
  %1369 = vmatmul.bf16.gmra.mxu0 %v743
  %v1370 = vpop.f32.mrf.mxu0
  %v1371 = vadd.f32 0.0, %v1370
  %v1372 = vpop.f32.mrf.mxu0
  %v1373 = vadd.f32 0.0, %v1372
  %1374 = vdwg.mxu0
  %1375 = vmatpush.bf16.msra.mxu0 0
  %1376 = vmatpush.bf16.msra.mxu0 0
  %1377 = vmatpush.bf16.msra.mxu0 0
  %1378 = vmatpush.bf16.msra.mxu0 0
  %1379 = vmatpush.bf16.msra.mxu0 0
  %1380 = vmatpush.bf16.msra.mxu0 0
  %1381 = vmatpush.bf16.msra.mxu0 %v843
  %1382 = vmatpush.bf16.msra.mxu0 %v580
  %1383 = vmatmul.bf16.gmra.mxu0 %v743
  %v1384 = vpop.f32.mrf.mxu0
  %v1385 = vadd.f32 0.0, %v1384
  %v1386 = vpop.f32.mrf.mxu0
  %v1387 = vadd.f32 0.0, %v1386
  %1388 = vdwg.mxu0
  %1389 = vmatpush.bf16.msra.mxu0 0
  %1390 = vmatpush.bf16.msra.mxu0 0
  %1391 = vmatpush.bf16.msra.mxu0 0
  %1392 = vmatpush.bf16.msra.mxu0 0
  %1393 = vmatpush.bf16.msra.mxu0 0
  %1394 = vmatpush.bf16.msra.mxu0 0
  %1395 = vmatpush.bf16.msra.mxu0 %v846
  %1396 = vmatpush.bf16.msra.mxu0 %v581
  %1397 = vmatmul.bf16.gmra.mxu0 %v743
  %v1398 = vpop.f32.mrf.mxu0
  %v1399 = vadd.f32 0.0, %v1398
  %v1400 = vpop.f32.mrf.mxu0
  %v1401 = vadd.f32 0.0, %v1400
  %1402 = vdwg.mxu0
  %1403 = vmatpush.bf16.msra.mxu0 0
  %1404 = vmatpush.bf16.msra.mxu0 0
  %1405 = vmatpush.bf16.msra.mxu0 0
  %1406 = vmatpush.bf16.msra.mxu0 0
  %1407 = vmatpush.bf16.msra.mxu0 0
  %1408 = vmatpush.bf16.msra.mxu0 0
  %1409 = vmatpush.bf16.msra.mxu0 %v849
  %1410 = vmatpush.bf16.msra.mxu0 %v582
  %1411 = vmatmul.bf16.gmra.mxu0 %v743
  %v1412 = vpop.f32.mrf.mxu0
  %v1413 = vadd.f32 0.0, %v1412
  %v1414 = vpop.f32.mrf.mxu0
  %v1415 = vadd.f32 0.0, %v1414
  %1416 = vdwg.mxu0
  %1417 = vmatpush.bf16.msra.mxu0 0
  %1418 = vmatpush.bf16.msra.mxu0 0
  %1419 = vmatpush.bf16.msra.mxu0 0
  %1420 = vmatpush.bf16.msra.mxu0 0
  %1421 = vmatpush.bf16.msra.mxu0 0
  %1422 = vmatpush.bf16.msra.mxu0 0
  %1423 = vmatpush.bf16.msra.mxu0 %v852
  %1424 = vmatpush.bf16.msra.mxu0 %v583
  %1425 = vmatmul.bf16.gmra.mxu0 %v743
  %v1426 = vpop.f32.mrf.mxu0
  %v1427 = vadd.f32 0.0, %v1426
  %v1428 = vpop.f32.mrf.mxu0
  %v1429 = vadd.f32 0.0, %v1428
  %1430 = vdwg.mxu0
  %1431 = vmatpush.bf16.msra.mxu0 0
  %1432 = vmatpush.bf16.msra.mxu0 0
  %1433 = vmatpush.bf16.msra.mxu0 0
  %1434 = vmatpush.bf16.msra.mxu0 0
  %1435 = vmatpush.bf16.msra.mxu0 0
  %1436 = vmatpush.bf16.msra.mxu0 0
  %1437 = vmatpush.bf16.msra.mxu0 %v855
  %1438 = vmatpush.bf16.msra.mxu0 %v584
  %1439 = vmatmul.bf16.gmra.mxu0 %v743
  %v1440 = vpop.f32.mrf.mxu0
  %v1441 = vadd.f32 0.0, %v1440
  %v1442 = vpop.f32.mrf.mxu0
  %v1443 = vadd.f32 0.0, %v1442
  %1444 = vdwg.mxu0
  %1445 = vmatpush.bf16.msra.mxu0 0
  %1446 = vmatpush.bf16.msra.mxu0 0
  %1447 = vmatpush.bf16.msra.mxu0 0
  %1448 = vmatpush.bf16.msra.mxu0 0
  %1449 = vmatpush.bf16.msra.mxu0 0
  %1450 = vmatpush.bf16.msra.mxu0 0
  %1451 = vmatpush.bf16.msra.mxu0 %v858
  %1452 = vmatpush.bf16.msra.mxu0 %v585
  %1453 = vmatmul.bf16.gmra.mxu0 %v743
  %v1454 = vpop.f32.mrf.mxu0
  %v1455 = vadd.f32 0.0, %v1454
  %v1456 = vpop.f32.mrf.mxu0
  %v1457 = vadd.f32 0.0, %v1456
  %1458 = vdwg.mxu0
  %1459 = vmatpush.bf16.msra.mxu0 0
  %1460 = vmatpush.bf16.msra.mxu0 0
  %1461 = vmatpush.bf16.msra.mxu0 0
  %1462 = vmatpush.bf16.msra.mxu0 0
  %1463 = vmatpush.bf16.msra.mxu0 0
  %1464 = vmatpush.bf16.msra.mxu0 0
  %1465 = vmatpush.bf16.msra.mxu0 %v861
  %1466 = vmatpush.bf16.msra.mxu0 %v586
  %1467 = vmatmul.bf16.gmra.mxu0 %v743
  %v1468 = vpop.f32.mrf.mxu0
  %v1469 = vadd.f32 0.0, %v1468
  %v1470 = vpop.f32.mrf.mxu0
  %v1471 = vadd.f32 0.0, %v1470
  %1472 = vdwg.mxu0
  %1473 = vmatpush.bf16.msra.mxu0 0
  %1474 = vmatpush.bf16.msra.mxu0 0
  %1475 = vmatpush.bf16.msra.mxu0 0
  %1476 = vmatpush.bf16.msra.mxu0 0
  %1477 = vmatpush.bf16.msra.mxu0 0
  %1478 = vmatpush.bf16.msra.mxu0 0
  %1479 = vmatpush.bf16.msra.mxu0 %v864
  %1480 = vmatpush.bf16.msra.mxu0 %v587
  %1481 = vmatmul.bf16.gmra.mxu0 %v743
  %v1482 = vpop.f32.mrf.mxu0
  %v1483 = vadd.f32 0.0, %v1482
  %v1484 = vpop.f32.mrf.mxu0
  %v1485 = vadd.f32 0.0, %v1484
  %1486 = vdwg.mxu0
  %1487 = vmatpush.bf16.msra.mxu0 0
  %1488 = vmatpush.bf16.msra.mxu0 0
  %1489 = vmatpush.bf16.msra.mxu0 0
  %1490 = vmatpush.bf16.msra.mxu0 0
  %1491 = vmatpush.bf16.msra.mxu0 0
  %1492 = vmatpush.bf16.msra.mxu0 0
  %1493 = vmatpush.bf16.msra.mxu0 %v867
  %1494 = vmatpush.bf16.msra.mxu0 %v588
  %1495 = vmatmul.bf16.gmra.mxu0 %v743
  %v1496 = vpop.f32.mrf.mxu0
  %v1497 = vadd.f32 0.0, %v1496
  %v1498 = vpop.f32.mrf.mxu0
  %v1499 = vadd.f32 0.0, %v1498
  %1500 = vdwg.mxu0
  %1501 = vmatpush.bf16.msra.mxu0 0
  %1502 = vmatpush.bf16.msra.mxu0 0
  %1503 = vmatpush.bf16.msra.mxu0 0
  %1504 = vmatpush.bf16.msra.mxu0 0
  %1505 = vmatpush.bf16.msra.mxu0 0
  %1506 = vmatpush.bf16.msra.mxu0 0
  %1507 = vmatpush.bf16.msra.mxu0 %v870
  %1508 = vmatpush.bf16.msra.mxu0 %v589
  %1509 = vmatmul.bf16.gmra.mxu0 %v743
  %v1510 = vpop.f32.mrf.mxu0
  %v1511 = vadd.f32 0.0, %v1510
  %v1512 = vpop.f32.mrf.mxu0
  %v1513 = vadd.f32 0.0, %v1512
  %1514 = vdwg.mxu0
  %1515 = vmatpush.bf16.msra.mxu0 0
  %1516 = vmatpush.bf16.msra.mxu0 0
  %1517 = vmatpush.bf16.msra.mxu0 0
  %1518 = vmatpush.bf16.msra.mxu0 0
  %1519 = vmatpush.bf16.msra.mxu0 0
  %1520 = vmatpush.bf16.msra.mxu0 0
  %1521 = vmatpush.bf16.msra.mxu0 %v873
  %1522 = vmatpush.bf16.msra.mxu0 %v590
  %1523 = vmatmul.bf16.gmra.mxu0 %v743
  %v1524 = vpop.f32.mrf.mxu0
  %v1525 = vadd.f32 0.0, %v1524
  %v1526 = vpop.f32.mrf.mxu0
  %v1527 = vadd.f32 0.0, %v1526
  %1528 = vdwg.mxu0
  %1529 = vmatpush.bf16.msra.mxu0 0
  %1530 = vmatpush.bf16.msra.mxu0 0
  %1531 = vmatpush.bf16.msra.mxu0 0
  %1532 = vmatpush.bf16.msra.mxu0 0
  %1533 = vmatpush.bf16.msra.mxu0 0
  %1534 = vmatpush.bf16.msra.mxu0 0
  %1535 = vmatpush.bf16.msra.mxu0 %v876
  %1536 = vmatpush.bf16.msra.mxu0 %v591
  %1537 = vmatmul.bf16.gmra.mxu0 %v743
  %v1538 = vpop.f32.mrf.mxu0
  %v1539 = vadd.f32 0.0, %v1538
  %v1540 = vpop.f32.mrf.mxu0
  %v1541 = vadd.f32 0.0, %v1540
  %1542 = vdwg.mxu0
  %1543 = vmatpush.bf16.msra.mxu0 0
  %1544 = vmatpush.bf16.msra.mxu0 0
  %1545 = vmatpush.bf16.msra.mxu0 0
  %1546 = vmatpush.bf16.msra.mxu0 0
  %1547 = vmatpush.bf16.msra.mxu0 0
  %1548 = vmatpush.bf16.msra.mxu0 0
  %1549 = vmatpush.bf16.msra.mxu0 %v879
  %1550 = vmatpush.bf16.msra.mxu0 %v592
  %1551 = vmatmul.bf16.gmra.mxu0 %v743
  %v1552 = vpop.f32.mrf.mxu0
  %v1553 = vadd.f32 0.0, %v1552
  %v1554 = vpop.f32.mrf.mxu0
  %v1555 = vadd.f32 0.0, %v1554
  %1556 = vdwg.mxu0
  %1557 = vmatpush.bf16.msra.mxu0 0
  %1558 = vmatpush.bf16.msra.mxu0 0
  %1559 = vmatpush.bf16.msra.mxu0 0
  %1560 = vmatpush.bf16.msra.mxu0 0
  %1561 = vmatpush.bf16.msra.mxu0 0
  %1562 = vmatpush.bf16.msra.mxu0 0
  %1563 = vmatpush.bf16.msra.mxu0 %v882
  %1564 = vmatpush.bf16.msra.mxu0 %v593
  %1565 = vmatmul.bf16.gmra.mxu0 %v743
  %v1566 = vpop.f32.mrf.mxu0
  %v1567 = vadd.f32 0.0, %v1566
  %v1568 = vpop.f32.mrf.mxu0
  %v1569 = vadd.f32 0.0, %v1568
  %1570 = vdwg.mxu0
  %1571 = vmatpush.bf16.msra.mxu0 0
  %1572 = vmatpush.bf16.msra.mxu0 0
  %1573 = vmatpush.bf16.msra.mxu0 0
  %1574 = vmatpush.bf16.msra.mxu0 0
  %1575 = vmatpush.bf16.msra.mxu0 0
  %1576 = vmatpush.bf16.msra.mxu0 0
  %1577 = vmatpush.bf16.msra.mxu0 %v885
  %1578 = vmatpush.bf16.msra.mxu0 %v594
  %1579 = vmatmul.bf16.gmra.mxu0 %v743
  %v1580 = vpop.f32.mrf.mxu0
  %v1581 = vadd.f32 0.0, %v1580
  %v1582 = vpop.f32.mrf.mxu0
  %v1583 = vadd.f32 0.0, %v1582
  %1584 = vdwg.mxu0
  %1585 = vmatpush.bf16.msra.mxu0 0
  %1586 = vmatpush.bf16.msra.mxu0 0
  %1587 = vmatpush.bf16.msra.mxu0 0
  %1588 = vmatpush.bf16.msra.mxu0 0
  %1589 = vmatpush.bf16.msra.mxu0 0
  %1590 = vmatpush.bf16.msra.mxu0 0
  %1591 = vmatpush.bf16.msra.mxu0 %v888
  %1592 = vmatpush.bf16.msra.mxu0 %v595
  %1593 = vmatmul.bf16.gmra.mxu0 %v743
  %v1594 = vpop.f32.mrf.mxu0
  %v1595 = vadd.f32 0.0, %v1594
  %v1596 = vpop.f32.mrf.mxu0
  %v1597 = vadd.f32 0.0, %v1596
  %1598 = vdwg.mxu0
  %1599 = vmatpush.bf16.msra.mxu0 0
  %1600 = vmatpush.bf16.msra.mxu0 0
  %1601 = vmatpush.bf16.msra.mxu0 0
  %1602 = vmatpush.bf16.msra.mxu0 0
  %1603 = vmatpush.bf16.msra.mxu0 0
  %1604 = vmatpush.bf16.msra.mxu0 0
  %1605 = vmatpush.bf16.msra.mxu0 %v891
  %1606 = vmatpush.bf16.msra.mxu0 %v596
  %1607 = vmatmul.bf16.gmra.mxu0 %v743
  %v1608 = vpop.f32.mrf.mxu0
  %v1609 = vadd.f32 0.0, %v1608
  %v1610 = vpop.f32.mrf.mxu0
  %v1611 = vadd.f32 0.0, %v1610
  %1612 = vdwg.mxu0
  %1613 = vmatpush.bf16.msra.mxu0 0
  %1614 = vmatpush.bf16.msra.mxu0 0
  %1615 = vmatpush.bf16.msra.mxu0 0
  %1616 = vmatpush.bf16.msra.mxu0 0
  %1617 = vmatpush.bf16.msra.mxu0 0
  %1618 = vmatpush.bf16.msra.mxu0 0
  %1619 = vmatpush.bf16.msra.mxu0 %v894
  %1620 = vmatpush.bf16.msra.mxu0 %v597
  %1621 = vmatmul.bf16.gmra.mxu0 %v743
  %v1622 = vpop.f32.mrf.mxu0
  %v1623 = vadd.f32 0.0, %v1622
  %v1624 = vpop.f32.mrf.mxu0
  %v1625 = vadd.f32 0.0, %v1624
  %1626 = vdwg.mxu0
  %1627 = vmatpush.bf16.msra.mxu0 0
  %1628 = vmatpush.bf16.msra.mxu0 0
  %1629 = vmatpush.bf16.msra.mxu0 0
  %1630 = vmatpush.bf16.msra.mxu0 0
  %1631 = vmatpush.bf16.msra.mxu0 0
  %1632 = vmatpush.bf16.msra.mxu0 0
  %1633 = vmatpush.bf16.msra.mxu0 %v897
  %1634 = vmatpush.bf16.msra.mxu0 %v598
  %1635 = vmatmul.bf16.gmra.mxu0 %v743
  %v1636 = vpop.f32.mrf.mxu0
  %v1637 = vadd.f32 0.0, %v1636
  %v1638 = vpop.f32.mrf.mxu0
  %v1639 = vadd.f32 0.0, %v1638
  %1640 = vdwg.mxu0
  %1641 = vmatpush.bf16.msra.mxu0 0
  %1642 = vmatpush.bf16.msra.mxu0 0
  %1643 = vmatpush.bf16.msra.mxu0 0
  %1644 = vmatpush.bf16.msra.mxu0 0
  %1645 = vmatpush.bf16.msra.mxu0 0
  %1646 = vmatpush.bf16.msra.mxu0 0
  %1647 = vmatpush.bf16.msra.mxu0 %v900
  %1648 = vmatpush.bf16.msra.mxu0 %v599
  %1649 = vmatmul.bf16.gmra.mxu0 %v743
  %v1650 = vpop.f32.mrf.mxu0
  %v1651 = vadd.f32 0.0, %v1650
  %v1652 = vpop.f32.mrf.mxu0
  %v1653 = vadd.f32 0.0, %v1652
  %1654 = vdwg.mxu0
  %1655 = vmatpush.bf16.msra.mxu0 0
  %1656 = vmatpush.bf16.msra.mxu0 0
  %1657 = vmatpush.bf16.msra.mxu0 0
  %1658 = vmatpush.bf16.msra.mxu0 0
  %1659 = vmatpush.bf16.msra.mxu0 0
  %1660 = vmatpush.bf16.msra.mxu0 0
  %1661 = vmatpush.bf16.msra.mxu0 %v903
  %1662 = vmatpush.bf16.msra.mxu0 %v600
  %1663 = vmatmul.bf16.gmra.mxu0 %v743
  %v1664 = vpop.f32.mrf.mxu0
  %v1665 = vadd.f32 0.0, %v1664
  %v1666 = vpop.f32.mrf.mxu0
  %v1667 = vadd.f32 0.0, %v1666
  %1668 = vdwg.mxu0
  %1669 = vmatpush.bf16.msra.mxu0 0
  %1670 = vmatpush.bf16.msra.mxu0 0
  %1671 = vmatpush.bf16.msra.mxu0 0
  %1672 = vmatpush.bf16.msra.mxu0 0
  %1673 = vmatpush.bf16.msra.mxu0 0
  %1674 = vmatpush.bf16.msra.mxu0 0
  %1675 = vmatpush.bf16.msra.mxu0 %v906
  %1676 = vmatpush.bf16.msra.mxu0 %v601
  %1677 = vmatmul.bf16.gmra.mxu0 %v743
  %v1678 = vpop.f32.mrf.mxu0
  %v1679 = vadd.f32 0.0, %v1678
  %v1680 = vpop.f32.mrf.mxu0
  %v1681 = vadd.f32 0.0, %v1680
  %1682 = vdwg.mxu0
  %1683 = vmatpush.bf16.msra.mxu0 0
  %1684 = vmatpush.bf16.msra.mxu0 0
  %1685 = vmatpush.bf16.msra.mxu0 0
  %1686 = vmatpush.bf16.msra.mxu0 0
  %1687 = vmatpush.bf16.msra.mxu0 0
  %1688 = vmatpush.bf16.msra.mxu0 0
  %1689 = vmatpush.bf16.msra.mxu0 %v909
  %1690 = vmatpush.bf16.msra.mxu0 %v602
  %1691 = vmatmul.bf16.gmra.mxu0 %v743
  %v1692 = vpop.f32.mrf.mxu0
  %v1693 = vadd.f32 0.0, %v1692
  %v1694 = vpop.f32.mrf.mxu0
  %v1695 = vadd.f32 0.0, %v1694
  %1696 = vdwg.mxu0
  %1697 = vmatpush.bf16.msra.mxu0 0
  %1698 = vmatpush.bf16.msra.mxu0 0
  %1699 = vmatpush.bf16.msra.mxu0 0
  %1700 = vmatpush.bf16.msra.mxu0 0
  %1701 = vmatpush.bf16.msra.mxu0 0
  %1702 = vmatpush.bf16.msra.mxu0 0
  %1703 = vmatpush.bf16.msra.mxu0 %v912
  %1704 = vmatpush.bf16.msra.mxu0 %v603
  %1705 = vmatmul.bf16.gmra.mxu0 %v743
  %v1706 = vpop.f32.mrf.mxu0
  %v1707 = vadd.f32 0.0, %v1706
  %v1708 = vpop.f32.mrf.mxu0
  %v1709 = vadd.f32 0.0, %v1708
  %1710 = vdwg.mxu0
  %1711 = vmatpush.bf16.msra.mxu0 0
  %1712 = vmatpush.bf16.msra.mxu0 0
  %1713 = vmatpush.bf16.msra.mxu0 0
  %1714 = vmatpush.bf16.msra.mxu0 0
  %1715 = vmatpush.bf16.msra.mxu0 0
  %1716 = vmatpush.bf16.msra.mxu0 0
  %1717 = vmatpush.bf16.msra.mxu0 %v915
  %1718 = vmatpush.bf16.msra.mxu0 %v604
  %1719 = vmatmul.bf16.gmra.mxu0 %v743
  %v1720 = vpop.f32.mrf.mxu0
  %v1721 = vadd.f32 0.0, %v1720
  %v1722 = vpop.f32.mrf.mxu0
  %v1723 = vadd.f32 0.0, %v1722
  %1724 = vdwg.mxu0
  %1725 = vmatpush.bf16.msra.mxu0 0
  %1726 = vmatpush.bf16.msra.mxu0 0
  %1727 = vmatpush.bf16.msra.mxu0 0
  %1728 = vmatpush.bf16.msra.mxu0 0
  %1729 = vmatpush.bf16.msra.mxu0 0
  %1730 = vmatpush.bf16.msra.mxu0 0
  %1731 = vmatpush.bf16.msra.mxu0 %v918
  %1732 = vmatpush.bf16.msra.mxu0 %v605
  %1733 = vmatmul.bf16.gmra.mxu0 %v743
  %v1734 = vpop.f32.mrf.mxu0
  %v1735 = vadd.f32 0.0, %v1734
  %v1736 = vpop.f32.mrf.mxu0
  %v1737 = vadd.f32 0.0, %v1736
  %1738 = vdwg.mxu0
  %1739 = vmatpush.bf16.msra.mxu0 0
  %1740 = vmatpush.bf16.msra.mxu0 0
  %1741 = vmatpush.bf16.msra.mxu0 0
  %1742 = vmatpush.bf16.msra.mxu0 0
  %1743 = vmatpush.bf16.msra.mxu0 0
  %1744 = vmatpush.bf16.msra.mxu0 0
  %1745 = vmatpush.bf16.msra.mxu0 %v921
  %1746 = vmatpush.bf16.msra.mxu0 %v606
  %1747 = vmatmul.bf16.gmra.mxu0 %v743
  %v1748 = vpop.f32.mrf.mxu0
  %v1749 = vadd.f32 0.0, %v1748
  %v1750 = vpop.f32.mrf.mxu0
  %v1751 = vadd.f32 0.0, %v1750
  %1752 = vdwg.mxu0
  %1753 = vmatpush.bf16.msra.mxu0 0
  %1754 = vmatpush.bf16.msra.mxu0 0
  %1755 = vmatpush.bf16.msra.mxu0 0
  %1756 = vmatpush.bf16.msra.mxu0 0
  %1757 = vmatpush.bf16.msra.mxu0 0
  %1758 = vmatpush.bf16.msra.mxu0 0
  %1759 = vmatpush.bf16.msra.mxu0 %v924
  %1760 = vmatpush.bf16.msra.mxu0 %v607
  %1761 = vmatmul.bf16.gmra.mxu0 %v743
  %v1762 = vpop.f32.mrf.mxu0
  %v1763 = vadd.f32 0.0, %v1762
  %v1764 = vpop.f32.mrf.mxu0
  %v1765 = vadd.f32 0.0, %v1764
  %1766 = vdwg.mxu0
  %1767 = vmatpush.bf16.msra.mxu0 0
  %1768 = vmatpush.bf16.msra.mxu0 0
  %1769 = vmatpush.bf16.msra.mxu0 0
  %1770 = vmatpush.bf16.msra.mxu0 0
  %1771 = vmatpush.bf16.msra.mxu0 0
  %1772 = vmatpush.bf16.msra.mxu0 0
  %1773 = vmatpush.bf16.msra.mxu0 %v927
  %1774 = vmatpush.bf16.msra.mxu0 %v608
  %1775 = vmatmul.bf16.gmra.mxu0 %v743
  %v1776 = vpop.f32.mrf.mxu0
  %v1777 = vadd.f32 0.0, %v1776
  %v1778 = vpop.f32.mrf.mxu0
  %v1779 = vadd.f32 0.0, %v1778
  %1780 = vdwg.mxu0
  %1781 = vmatpush.bf16.msra.mxu0 0
  %1782 = vmatpush.bf16.msra.mxu0 0
  %1783 = vmatpush.bf16.msra.mxu0 0
  %1784 = vmatpush.bf16.msra.mxu0 0
  %1785 = vmatpush.bf16.msra.mxu0 0
  %1786 = vmatpush.bf16.msra.mxu0 0
  %1787 = vmatpush.bf16.msra.mxu0 %v930
  %1788 = vmatpush.bf16.msra.mxu0 %v609
  %1789 = vmatmul.bf16.gmra.mxu0 %v743
  %v1790 = vpop.f32.mrf.mxu0
  %v1791 = vadd.f32 0.0, %v1790
  %v1792 = vpop.f32.mrf.mxu0
  %v1793 = vadd.f32 0.0, %v1792
  %1794 = vdwg.mxu0
  %1795 = vmatpush.bf16.msra.mxu0 0
  %1796 = vmatpush.bf16.msra.mxu0 0
  %1797 = vmatpush.bf16.msra.mxu0 0
  %1798 = vmatpush.bf16.msra.mxu0 0
  %1799 = vmatpush.bf16.msra.mxu0 0
  %1800 = vmatpush.bf16.msra.mxu0 0
  %1801 = vmatpush.bf16.msra.mxu0 %v933
  %1802 = vmatpush.bf16.msra.mxu0 %v610
  %1803 = vmatmul.bf16.gmra.mxu0 %v743
  %v1804 = vpop.f32.mrf.mxu0
  %v1805 = vadd.f32 0.0, %v1804
  %v1806 = vpop.f32.mrf.mxu0
  %v1807 = vadd.f32 0.0, %v1806
  %1808 = vdwg.mxu0
  %1809 = vmatpush.bf16.msra.mxu0 0
  %1810 = vmatpush.bf16.msra.mxu0 0
  %1811 = vmatpush.bf16.msra.mxu0 0
  %1812 = vmatpush.bf16.msra.mxu0 0
  %1813 = vmatpush.bf16.msra.mxu0 0
  %1814 = vmatpush.bf16.msra.mxu0 0
  %1815 = vmatpush.bf16.msra.mxu0 %v936
  %1816 = vmatpush.bf16.msra.mxu0 %v611
  %1817 = vmatmul.bf16.gmra.mxu0 %v743
  %v1818 = vpop.f32.mrf.mxu0
  %v1819 = vadd.f32 0.0, %v1818
  %v1820 = vpop.f32.mrf.mxu0
  %v1821 = vadd.f32 0.0, %v1820
  %1822 = vdwg.mxu0
  %1823 = vmatpush.bf16.msra.mxu0 0
  %1824 = vmatpush.bf16.msra.mxu0 0
  %1825 = vmatpush.bf16.msra.mxu0 0
  %1826 = vmatpush.bf16.msra.mxu0 0
  %1827 = vmatpush.bf16.msra.mxu0 0
  %1828 = vmatpush.bf16.msra.mxu0 0
  %1829 = vmatpush.bf16.msra.mxu0 %v939
  %1830 = vmatpush.bf16.msra.mxu0 %v612
  %1831 = vmatmul.bf16.gmra.mxu0 %v743
  %v1832 = vpop.f32.mrf.mxu0
  %v1833 = vadd.f32 0.0, %v1832
  %v1834 = vpop.f32.mrf.mxu0
  %v1835 = vadd.f32 0.0, %v1834
  %1836 = vdwg.mxu0
  %v1837 = vmax.f32 %v951, %v1175
  %v1838 = vmax.f32 %v965, %v1189
  %v1839 = vmax.f32 %v979, %v1203
  %v1840 = vmax.f32 %v993, %v1217
  %v1841 = vmax.f32 %v1007, %v1231
  %v1842 = vmax.f32 %v1021, %v1245
  %v1843 = vmax.f32 %v1035, %v1259
  %v1844 = vmax.f32 %v1049, %v1273
  %v1845 = vmax.f32 %v1063, %v1287
  %v1846 = vmax.f32 %v1077, %v1301
  %v1847 = vmax.f32 %v1091, %v1315
  %v1848 = vmax.f32 %v1105, %v1329
  %v1849 = vmax.f32 %v1119, %v1343
  %v1850 = vmax.f32 %v1133, %v1357
  %v1851 = vmax.f32 %v1147, %v1371
  %v1852 = vmax.f32 %v1161, %v1385
  %v1853 = vmax.f32 %v953, %v1177
  %v1854 = vmax.f32 %v967, %v1191
  %v1855 = vmax.f32 %v981, %v1205
  %v1856 = vmax.f32 %v995, %v1219
  %v1857 = vmax.f32 %v1009, %v1233
  %v1858 = vmax.f32 %v1023, %v1247
  %v1859 = vmax.f32 %v1037, %v1261
  %v1860 = vmax.f32 %v1051, %v1275
  %v1861 = vmax.f32 %v1065, %v1289
  %v1862 = vmax.f32 %v1079, %v1303
  %v1863 = vmax.f32 %v1093, %v1317
  %v1864 = vmax.f32 %v1107, %v1331
  %v1865 = vmax.f32 %v1121, %v1345
  %v1866 = vmax.f32 %v1135, %v1359
  %v1867 = vmax.f32 %v1149, %v1373
  %v1868 = vmax.f32 %v1163, %v1387
  %v1869 = vmax.f32 %v1399, %v1623
  %v1870 = vmax.f32 %v1413, %v1637
  %v1871 = vmax.f32 %v1427, %v1651
  %v1872 = vmax.f32 %v1441, %v1665
  %v1873 = vmax.f32 %v1455, %v1679
  %v1874 = vmax.f32 %v1469, %v1693
  %v1875 = vmax.f32 %v1483, %v1707
  %v1876 = vmax.f32 %v1497, %v1721
  %v1877 = vmax.f32 %v1511, %v1735
  %v1878 = vmax.f32 %v1525, %v1749
  %v1879 = vmax.f32 %v1539, %v1763
  %v1880 = vmax.f32 %v1553, %v1777
  %v1881 = vmax.f32 %v1567, %v1791
  %v1882 = vmax.f32 %v1581, %v1805
  %v1883 = vmax.f32 %v1595, %v1819
  %v1884 = vmax.f32 %v1609, %v1833
  %v1885 = vmax.f32 %v1401, %v1625
  %v1886 = vmax.f32 %v1415, %v1639
  %v1887 = vmax.f32 %v1429, %v1653
  %v1888 = vmax.f32 %v1443, %v1667
  %v1889 = vmax.f32 %v1457, %v1681
  %v1890 = vmax.f32 %v1471, %v1695
  %v1891 = vmax.f32 %v1485, %v1709
  %v1892 = vmax.f32 %v1499, %v1723
  %v1893 = vmax.f32 %v1513, %v1737
  %v1894 = vmax.f32 %v1527, %v1751
  %v1895 = vmax.f32 %v1541, %v1765
  %v1896 = vmax.f32 %v1555, %v1779
  %v1897 = vmax.f32 %v1569, %v1793
  %v1898 = vmax.f32 %v1583, %v1807
  %v1899 = vmax.f32 %v1597, %v1821
  %v1900 = vmax.f32 %v1611, %v1835
  %v1901 = vmax.f32 %v1837, %v1869
  %v1902 = vmax.f32 %v1838, %v1870
  %v1903 = vmax.f32 %v1839, %v1871
  %v1904 = vmax.f32 %v1840, %v1872
  %v1905 = vmax.f32 %v1841, %v1873
  %v1906 = vmax.f32 %v1842, %v1874
  %v1907 = vmax.f32 %v1843, %v1875
  %v1908 = vmax.f32 %v1844, %v1876
  %v1909 = vmax.f32 %v1845, %v1877
  %v1910 = vmax.f32 %v1846, %v1878
  %v1911 = vmax.f32 %v1847, %v1879
  %v1912 = vmax.f32 %v1848, %v1880
  %v1913 = vmax.f32 %v1849, %v1881
  %v1914 = vmax.f32 %v1850, %v1882
  %v1915 = vmax.f32 %v1851, %v1883
  %v1916 = vmax.f32 %v1852, %v1884
  %v1917 = vmax.f32 %v1853, %v1885
  %v1918 = vmax.f32 %v1854, %v1886
  %v1919 = vmax.f32 %v1855, %v1887
  %v1920 = vmax.f32 %v1856, %v1888
  %v1921 = vmax.f32 %v1857, %v1889
  %v1922 = vmax.f32 %v1858, %v1890
  %v1923 = vmax.f32 %v1859, %v1891
  %v1924 = vmax.f32 %v1860, %v1892
  %v1925 = vmax.f32 %v1861, %v1893
  %v1926 = vmax.f32 %v1862, %v1894
  %v1927 = vmax.f32 %v1863, %v1895
  %v1928 = vmax.f32 %v1864, %v1896
  %v1929 = vmax.f32 %v1865, %v1897
  %v1930 = vmax.f32 %v1866, %v1898
  %v1931 = vmax.f32 %v1867, %v1899
  %v1932 = vmax.f32 %v1868, %v1900
  %v1933 = vld [vmem:[%s2] sm:$0xff]
  %v1934 = vld [vmem:[%s2 + $0x8] sm:$0xff]
  %1936 = vset.pattern.permute.xlu0 0
  %1937 = vperm.xlu0 %1936, %v1933
  %v1938 = vpop.permute.xlu0 %1937
  %1941 = vset.pattern.permute.xlu0 0
  %1942 = vperm.xlu0 %1941, %v1934
  %v1943 = vpop.permute.xlu0 %1942
  %v1945 = vadd.f32 %v1901, %v1938
  %v1946 = vadd.f32 %v1902, %v1938
  %v1947 = vadd.f32 %v1903, %v1938
  %v1948 = vadd.f32 %v1904, %v1938
  %v1949 = vadd.f32 %v1905, %v1938
  %v1950 = vadd.f32 %v1906, %v1938
  %v1951 = vadd.f32 %v1907, %v1938
  %v1952 = vadd.f32 %v1908, %v1938
  %v1953 = vadd.f32 %v1909, %v1938
  %v1954 = vadd.f32 %v1910, %v1938
  %v1955 = vadd.f32 %v1911, %v1938
  %v1956 = vadd.f32 %v1912, %v1938
  %v1957 = vadd.f32 %v1913, %v1938
  %v1958 = vadd.f32 %v1914, %v1938
  %v1959 = vadd.f32 %v1915, %v1938
  %v1960 = vadd.f32 %v1916, %v1938
  %v1961 = vadd.f32 %v1917, %v1943
  %v1962 = vadd.f32 %v1918, %v1943
  %v1963 = vadd.f32 %v1919, %v1943
  %v1964 = vadd.f32 %v1920, %v1943
  %v1965 = vadd.f32 %v1921, %v1943
  %v1966 = vadd.f32 %v1922, %v1943
  %v1967 = vadd.f32 %v1923, %v1943
  %v1968 = vadd.f32 %v1924, %v1943
  %v1969 = vadd.f32 %v1925, %v1943
  %v1970 = vadd.f32 %v1926, %v1943
  %v1971 = vadd.f32 %v1927, %v1943
  %v1972 = vadd.f32 %v1928, %v1943
  %v1973 = vadd.f32 %v1929, %v1943
  %v1974 = vadd.f32 %v1930, %v1943
  %v1975 = vadd.f32 %v1931, %v1943
  %v1976 = vadd.f32 %v1932, %v1943
  %v1977 = vmax.f32 %v1945, 0.0
  %v1978 = vmax.f32 %v1946, 0.0
  %v1979 = vmax.f32 %v1947, 0.0
  %v1980 = vmax.f32 %v1948, 0.0
  %v1981 = vmax.f32 %v1949, 0.0
  %v1982 = vmax.f32 %v1950, 0.0
  %v1983 = vmax.f32 %v1951, 0.0
  %v1984 = vmax.f32 %v1952, 0.0
  %v1985 = vmax.f32 %v1953, 0.0
  %v1986 = vmax.f32 %v1954, 0.0
  %v1987 = vmax.f32 %v1955, 0.0
  %v1988 = vmax.f32 %v1956, 0.0
  %v1989 = vmax.f32 %v1957, 0.0
  %v1990 = vmax.f32 %v1958, 0.0
  %v1991 = vmax.f32 %v1959, 0.0
  %v1992 = vmax.f32 %v1960, 0.0
  %v1993 = vmax.f32 %v1961, 0.0
  %v1994 = vmax.f32 %v1962, 0.0
  %v1995 = vmax.f32 %v1963, 0.0
  %v1996 = vmax.f32 %v1964, 0.0
  %v1997 = vmax.f32 %v1965, 0.0
  %v1998 = vmax.f32 %v1966, 0.0
  %v1999 = vmax.f32 %v1967, 0.0
  %v2000 = vmax.f32 %v1968, 0.0
  %v2001 = vmax.f32 %v1969, 0.0
  %v2002 = vmax.f32 %v1970, 0.0
  %v2003 = vmax.f32 %v1971, 0.0
  %v2004 = vmax.f32 %v1972, 0.0
  %v2005 = vmax.f32 %v1973, 0.0
  %v2006 = vmax.f32 %v1974, 0.0
  %v2007 = vmax.f32 %v1975, 0.0
  %v2008 = vmax.f32 %v1976, 0.0
  %v2009 = vpack.c.bf16 %v1978, %v1977
  %v2010 = vpack.c.bf16 %v1980, %v1979
  %v2011 = vpack.c.bf16 %v1982, %v1981
  %v2012 = vpack.c.bf16 %v1984, %v1983
  %v2013 = vpack.c.bf16 %v1986, %v1985
  %v2014 = vpack.c.bf16 %v1988, %v1987
  %v2015 = vpack.c.bf16 %v1990, %v1989
  %v2016 = vpack.c.bf16 %v1992, %v1991
  %v2017 = vpack.c.bf16 %v1994, %v1993
  %v2018 = vpack.c.bf16 %v1996, %v1995
  %v2019 = vpack.c.bf16 %v1998, %v1997
  %v2020 = vpack.c.bf16 %v2000, %v1999
  %v2021 = vpack.c.bf16 %v2002, %v2001
  %v2022 = vpack.c.bf16 %v2004, %v2003
  %v2023 = vpack.c.bf16 %v2006, %v2005
  %v2024 = vpack.c.bf16 %v2008, %v2007
  %2025 = vst [vmem:[#allocation2] sm:$0xff] %v2009
  %2026 = vst [vmem:[#allocation2 + $0x8] sm:$0xff] %v2017
  %2027 = vst [vmem:[#allocation2 + $0x10] sm:$0xff] %v2010
  %2028 = vst [vmem:[#allocation2 + $0x18] sm:$0xff] %v2018
  %2029 = vst [vmem:[#allocation2 + $0x20] sm:$0xff] %v2011
  %2030 = vst [vmem:[#allocation2 + $0x28] sm:$0xff] %v2019
  %2031 = vst [vmem:[#allocation2 + $0x30] sm:$0xff] %v2012
  %2032 = vst [vmem:[#allocation2 + $0x38] sm:$0xff] %v2020
  %2033 = vst [vmem:[#allocation2 + $0x40] sm:$0xff] %v2013
  %2034 = vst [vmem:[#allocation2 + $0x48] sm:$0xff] %v2021
  %2035 = vst [vmem:[#allocation2 + $0x50] sm:$0xff] %v2014
  %2036 = vst [vmem:[#allocation2 + $0x58] sm:$0xff] %v2022
  %2037 = vst [vmem:[#allocation2 + $0x60] sm:$0xff] %v2015
  %2038 = vst [vmem:[#allocation2 + $0x68] sm:$0xff] %v2023
  %2039 = vst [vmem:[#allocation2 + $0x70] sm:$0xff] %v2016
  %2040 = vst [vmem:[#allocation2 + $0x78] sm:$0xff] %v2024
  %v2041 = vld [vmem:[#allocation2] sm:$0xff]
  %v2042 = vld [vmem:[#allocation2 + $0x8] sm:$0xff]
  %v2043 = vld [vmem:[#allocation2 + $0x10] sm:$0xff]
  %v2044 = vld [vmem:[#allocation2 + $0x18] sm:$0xff]
  %v2045 = vld [vmem:[#allocation2 + $0x20] sm:$0xff]
  %v2046 = vld [vmem:[#allocation2 + $0x28] sm:$0xff]
  %v2047 = vld [vmem:[#allocation2 + $0x30] sm:$0xff]
  %v2048 = vld [vmem:[#allocation2 + $0x38] sm:$0xff]
  %v2049 = vld [vmem:[#allocation2 + $0x40] sm:$0xff]
  %v2050 = vld [vmem:[#allocation2 + $0x48] sm:$0xff]
  %v2051 = vld [vmem:[#allocation2 + $0x50] sm:$0xff]
  %v2052 = vld [vmem:[#allocation2 + $0x58] sm:$0xff]
  %v2053 = vld [vmem:[#allocation2 + $0x60] sm:$0xff]
  %v2054 = vld [vmem:[#allocation2 + $0x68] sm:$0xff]
  %v2055 = vld [vmem:[#allocation2 + $0x70] sm:$0xff]
  %v2056 = vld [vmem:[#allocation2 + $0x78] sm:$0xff]
  %v2057 = vld [vmem:[%s3] sm:$0xff]
  %v2058 = vld [vmem:[%s3 + $0x8] sm:$0xff]
  %v2059 = vld [vmem:[%s3 + $0x10] sm:$0xff]
  %v2060 = vld [vmem:[%s3 + $0x18] sm:$0xff]
  %v2061 = vld [vmem:[%s3 + $0x20] sm:$0xff]
  %v2062 = vld [vmem:[%s3 + $0x28] sm:$0xff]
  %v2063 = vld [vmem:[%s3 + $0x30] sm:$0xff]
  %v2064 = vld [vmem:[%s3 + $0x38] sm:$0xff]
  %v2065 = vld [vmem:[%s3 + $0x40] sm:$0xff]
  %v2066 = vld [vmem:[%s3 + $0x48] sm:$0xff]
  %v2067 = vld [vmem:[%s3 + $0x50] sm:$0xff]
  %v2068 = vld [vmem:[%s3 + $0x58] sm:$0xff]
  %v2069 = vld [vmem:[%s3 + $0x60] sm:$0xff]
  %v2070 = vld [vmem:[%s3 + $0x68] sm:$0xff]
  %v2071 = vld [vmem:[%s3 + $0x70] sm:$0xff]
  %v2072 = vld [vmem:[%s3 + $0x78] sm:$0xff]
  %v2073 = vld [vmem:[%s3 + $0x80] sm:$0xff]
  %v2074 = vld [vmem:[%s3 + $0x88] sm:$0xff]
  %v2075 = vld [vmem:[%s3 + $0x90] sm:$0xff]
  %v2076 = vld [vmem:[%s3 + $0x98] sm:$0xff]
  %v2077 = vld [vmem:[%s3 + $0xa0] sm:$0xff]
  %v2078 = vld [vmem:[%s3 + $0xa8] sm:$0xff]
  %v2079 = vld [vmem:[%s3 + $0xb0] sm:$0xff]
  %v2080 = vld [vmem:[%s3 + $0xb8] sm:$0xff]
  %v2081 = vld [vmem:[%s3 + $0xc0] sm:$0xff]
  %v2082 = vld [vmem:[%s3 + $0xc8] sm:$0xff]
  %v2083 = vld [vmem:[%s3 + $0xd0] sm:$0xff]
  %v2084 = vld [vmem:[%s3 + $0xd8] sm:$0xff]
  %v2085 = vld [vmem:[%s3 + $0xe0] sm:$0xff]
  %v2086 = vld [vmem:[%s3 + $0xe8] sm:$0xff]
  %v2087 = vld [vmem:[%s3 + $0xf0] sm:$0xff]
  %v2088 = vld [vmem:[%s3 + $0xf8] sm:$0xff]
  %v2105 = vunpack.c.l.b16 %v2041
  %v2106 = vunpack.c.h.b16 %v2041
  %v2107 = vunpack.c.l.b16 %v2042
  %v2108 = vunpack.c.h.b16 %v2042
  %v2109 = vunpack.c.l.b16 %v2043
  %v2110 = vunpack.c.h.b16 %v2043
  %v2111 = vunpack.c.l.b16 %v2044
  %v2112 = vunpack.c.h.b16 %v2044
  %v2113 = vunpack.c.l.b16 %v2045
  %v2114 = vunpack.c.h.b16 %v2045
  %v2115 = vunpack.c.l.b16 %v2046
  %v2116 = vunpack.c.h.b16 %v2046
  %v2117 = vunpack.c.l.b16 %v2047
  %v2118 = vunpack.c.h.b16 %v2047
  %v2119 = vunpack.c.l.b16 %v2048
  %v2120 = vunpack.c.h.b16 %v2048
  %v2121 = vunpack.c.l.b16 %v2049
  %v2122 = vunpack.c.h.b16 %v2049
  %v2123 = vunpack.c.l.b16 %v2050
  %v2124 = vunpack.c.h.b16 %v2050
  %v2125 = vunpack.c.l.b16 %v2051
  %v2126 = vunpack.c.h.b16 %v2051
  %v2127 = vunpack.c.l.b16 %v2052
  %v2128 = vunpack.c.h.b16 %v2052
  %v2129 = vunpack.c.l.b16 %v2053
  %v2130 = vunpack.c.h.b16 %v2053
  %v2131 = vunpack.c.l.b16 %v2054
  %v2132 = vunpack.c.h.b16 %v2054
  %v2133 = vunpack.c.l.b16 %v2055
  %v2134 = vunpack.c.h.b16 %v2055
  %v2135 = vunpack.c.l.b16 %v2056
  %v2136 = vunpack.c.h.b16 %v2056
  %v2137 = vpack.c.b16 %v2107, %v2105
  %v2138 = vpack.c.b16 %v2108, %v2106
  %v2139 = vpack.c.b16 %v2111, %v2109
  %v2140 = vpack.c.b16 %v2112, %v2110
  %v2141 = vpack.c.b16 %v2115, %v2113
  %v2142 = vpack.c.b16 %v2116, %v2114
  %v2143 = vpack.c.b16 %v2119, %v2117
  %v2144 = vpack.c.b16 %v2120, %v2118
  %v2145 = vpack.c.b16 %v2123, %v2121
  %v2146 = vpack.c.b16 %v2124, %v2122
  %v2147 = vpack.c.b16 %v2127, %v2125
  %v2148 = vpack.c.b16 %v2128, %v2126
  %v2149 = vpack.c.b16 %v2131, %v2129
  %v2150 = vpack.c.b16 %v2132, %v2130
  %v2151 = vpack.c.b16 %v2135, %v2133
  %v2152 = vpack.c.b16 %v2136, %v2134
  %v2201 = vunpack.c.l.b16 %v2057
  %v2202 = vunpack.c.h.b16 %v2057
  %v2203 = vunpack.c.l.b16 %v2058
  %v2204 = vunpack.c.h.b16 %v2058
  %v2205 = vunpack.c.l.b16 %v2059
  %v2206 = vunpack.c.h.b16 %v2059
  %v2207 = vunpack.c.l.b16 %v2060
  %v2208 = vunpack.c.h.b16 %v2060
  %v2209 = vunpack.c.l.b16 %v2061
  %v2210 = vunpack.c.h.b16 %v2061
  %v2211 = vunpack.c.l.b16 %v2062
  %v2212 = vunpack.c.h.b16 %v2062
  %v2213 = vunpack.c.l.b16 %v2063
  %v2214 = vunpack.c.h.b16 %v2063
  %v2215 = vunpack.c.l.b16 %v2064
  %v2216 = vunpack.c.h.b16 %v2064
  %v2217 = vunpack.c.l.b16 %v2065
  %v2218 = vunpack.c.h.b16 %v2065
  %v2219 = vunpack.c.l.b16 %v2066
  %v2220 = vunpack.c.h.b16 %v2066
  %v2221 = vunpack.c.l.b16 %v2067
  %v2222 = vunpack.c.h.b16 %v2067
  %v2223 = vunpack.c.l.b16 %v2068
  %v2224 = vunpack.c.h.b16 %v2068
  %v2225 = vunpack.c.l.b16 %v2069
  %v2226 = vunpack.c.h.b16 %v2069
  %v2227 = vunpack.c.l.b16 %v2070
  %v2228 = vunpack.c.h.b16 %v2070
  %v2229 = vunpack.c.l.b16 %v2071
  %v2230 = vunpack.c.h.b16 %v2071
  %v2231 = vunpack.c.l.b16 %v2072
  %v2232 = vunpack.c.h.b16 %v2072
  %v2233 = vunpack.c.l.b16 %v2073
  %v2234 = vunpack.c.h.b16 %v2073
  %v2235 = vunpack.c.l.b16 %v2074
  %v2236 = vunpack.c.h.b16 %v2074
  %v2237 = vunpack.c.l.b16 %v2075
  %v2238 = vunpack.c.h.b16 %v2075
  %v2239 = vunpack.c.l.b16 %v2076
  %v2240 = vunpack.c.h.b16 %v2076
  %v2241 = vunpack.c.l.b16 %v2077
  %v2242 = vunpack.c.h.b16 %v2077
  %v2243 = vunpack.c.l.b16 %v2078
  %v2244 = vunpack.c.h.b16 %v2078
  %v2245 = vunpack.c.l.b16 %v2079
  %v2246 = vunpack.c.h.b16 %v2079
  %v2247 = vunpack.c.l.b16 %v2080
  %v2248 = vunpack.c.h.b16 %v2080
  %v2249 = vunpack.c.l.b16 %v2081
  %v2250 = vunpack.c.h.b16 %v2081
  %v2251 = vunpack.c.l.b16 %v2082
  %v2252 = vunpack.c.h.b16 %v2082
  %v2253 = vunpack.c.l.b16 %v2083
  %v2254 = vunpack.c.h.b16 %v2083
  %v2255 = vunpack.c.l.b16 %v2084
  %v2256 = vunpack.c.h.b16 %v2084
  %v2257 = vunpack.c.l.b16 %v2085
  %v2258 = vunpack.c.h.b16 %v2085
  %v2259 = vunpack.c.l.b16 %v2086
  %v2260 = vunpack.c.h.b16 %v2086
  %v2261 = vunpack.c.l.b16 %v2087
  %v2262 = vunpack.c.h.b16 %v2087
  %v2263 = vunpack.c.l.b16 %v2088
  %v2264 = vunpack.c.h.b16 %v2088
  %v2265 = vpack.c.b16 %v2203, %v2201
  %v2266 = vpack.c.b16 %v2204, %v2202
  %v2267 = vpack.c.b16 %v2207, %v2205
  %v2268 = vpack.c.b16 %v2208, %v2206
  %v2269 = vpack.c.b16 %v2211, %v2209
  %v2270 = vpack.c.b16 %v2212, %v2210
  %v2271 = vpack.c.b16 %v2215, %v2213
  %v2272 = vpack.c.b16 %v2216, %v2214
  %v2273 = vpack.c.b16 %v2219, %v2217
  %v2274 = vpack.c.b16 %v2220, %v2218
  %v2275 = vpack.c.b16 %v2223, %v2221
  %v2276 = vpack.c.b16 %v2224, %v2222
  %v2277 = vpack.c.b16 %v2227, %v2225
  %v2278 = vpack.c.b16 %v2228, %v2226
  %v2279 = vpack.c.b16 %v2231, %v2229
  %v2280 = vpack.c.b16 %v2232, %v2230
  %v2281 = vpack.c.b16 %v2235, %v2233
  %v2282 = vpack.c.b16 %v2236, %v2234
  %v2283 = vpack.c.b16 %v2239, %v2237
  %v2284 = vpack.c.b16 %v2240, %v2238
  %v2285 = vpack.c.b16 %v2243, %v2241
  %v2286 = vpack.c.b16 %v2244, %v2242
  %v2287 = vpack.c.b16 %v2247, %v2245
  %v2288 = vpack.c.b16 %v2248, %v2246
  %v2289 = vpack.c.b16 %v2251, %v2249
  %v2290 = vpack.c.b16 %v2252, %v2250
  %v2291 = vpack.c.b16 %v2255, %v2253
  %v2292 = vpack.c.b16 %v2256, %v2254
  %v2293 = vpack.c.b16 %v2259, %v2257
  %v2294 = vpack.c.b16 %v2260, %v2258
  %v2295 = vpack.c.b16 %v2263, %v2261
  %v2296 = vpack.c.b16 %v2264, %v2262
  %2329 = vmatpush.bf16.msra.mxu0 %v2279
  %2330 = vmatpush.bf16.msra.mxu0 %v2277
  %2331 = vmatpush.bf16.msra.mxu0 %v2275
  %2332 = vmatpush.bf16.msra.mxu0 %v2273
  %2333 = vmatpush.bf16.msra.mxu0 %v2271
  %2334 = vmatpush.bf16.msra.mxu0 %v2269
  %2335 = vmatpush.bf16.msra.mxu0 %v2267
  %2336 = vmatpush.bf16.msra.mxu0 %v2265
  %2337 = vmatmul.bf16.gmra.mxu0 %v2137
  %v2338 = vpop.f32.mrf.mxu0
  %v2339 = vadd.f32 0.0, %v2338
  %v2340 = vpop.f32.mrf.mxu0
  %v2341 = vadd.f32 0.0, %v2340
  %2342 = vmatmul.bf16.gmra.mxu0 %v2139
  %v2343 = vpop.f32.mrf.mxu0
  %v2344 = vadd.f32 0.0, %v2343
  %v2345 = vpop.f32.mrf.mxu0
  %v2346 = vadd.f32 0.0, %v2345
  %2347 = vmatmul.bf16.gmra.mxu0 %v2141
  %v2348 = vpop.f32.mrf.mxu0
  %v2349 = vadd.f32 0.0, %v2348
  %v2350 = vpop.f32.mrf.mxu0
  %v2351 = vadd.f32 0.0, %v2350
  %2352 = vmatmul.bf16.gmra.mxu0 %v2143
  %v2353 = vpop.f32.mrf.mxu0
  %v2354 = vadd.f32 0.0, %v2353
  %v2355 = vpop.f32.mrf.mxu0
  %v2356 = vadd.f32 0.0, %v2355
  %2357 = vmatmul.bf16.gmra.mxu0 %v2145
  %v2358 = vpop.f32.mrf.mxu0
  %v2359 = vadd.f32 0.0, %v2358
  %v2360 = vpop.f32.mrf.mxu0
  %v2361 = vadd.f32 0.0, %v2360
  %2362 = vmatmul.bf16.gmra.mxu0 %v2147
  %v2363 = vpop.f32.mrf.mxu0
  %v2364 = vadd.f32 0.0, %v2363
  %v2365 = vpop.f32.mrf.mxu0
  %v2366 = vadd.f32 0.0, %v2365
  %2367 = vmatmul.bf16.gmra.mxu0 %v2149
  %v2368 = vpop.f32.mrf.mxu0
  %v2369 = vadd.f32 0.0, %v2368
  %v2370 = vpop.f32.mrf.mxu0
  %v2371 = vadd.f32 0.0, %v2370
  %2372 = vmatmul.bf16.gmra.mxu0 %v2151
  %v2373 = vpop.f32.mrf.mxu0
  %v2374 = vadd.f32 0.0, %v2373
  %v2375 = vpop.f32.mrf.mxu0
  %v2376 = vadd.f32 0.0, %v2375
  %2377 = vdwg.mxu0
  %2378 = vmatpush.bf16.msra.mxu0 %v2295
  %2379 = vmatpush.bf16.msra.mxu0 %v2293
  %2380 = vmatpush.bf16.msra.mxu0 %v2291
  %2381 = vmatpush.bf16.msra.mxu0 %v2289
  %2382 = vmatpush.bf16.msra.mxu0 %v2287
  %2383 = vmatpush.bf16.msra.mxu0 %v2285
  %2384 = vmatpush.bf16.msra.mxu0 %v2283
  %2385 = vmatpush.bf16.msra.mxu0 %v2281
  %2386 = vmatmul.bf16.gmra.mxu0 %v2138
  %v2387 = vpop.f32.mrf.mxu0
  %v2388 = vadd.f32 %v2339, %v2387
  %v2389 = vpop.f32.mrf.mxu0
  %v2390 = vadd.f32 %v2341, %v2389
  %2391 = vmatmul.bf16.gmra.mxu0 %v2140
  %v2392 = vpop.f32.mrf.mxu0
  %v2393 = vadd.f32 %v2344, %v2392
  %v2394 = vpop.f32.mrf.mxu0
  %v2395 = vadd.f32 %v2346, %v2394
  %2396 = vmatmul.bf16.gmra.mxu0 %v2142
  %v2397 = vpop.f32.mrf.mxu0
  %v2398 = vadd.f32 %v2349, %v2397
  %v2399 = vpop.f32.mrf.mxu0
  %v2400 = vadd.f32 %v2351, %v2399
  %2401 = vmatmul.bf16.gmra.mxu0 %v2144
  %v2402 = vpop.f32.mrf.mxu0
  %v2403 = vadd.f32 %v2354, %v2402
  %v2404 = vpop.f32.mrf.mxu0
  %v2405 = vadd.f32 %v2356, %v2404
  %2406 = vmatmul.bf16.gmra.mxu0 %v2146
  %v2407 = vpop.f32.mrf.mxu0
  %v2408 = vadd.f32 %v2359, %v2407
  %v2409 = vpop.f32.mrf.mxu0
  %v2410 = vadd.f32 %v2361, %v2409
  %2411 = vmatmul.bf16.gmra.mxu0 %v2148
  %v2412 = vpop.f32.mrf.mxu0
  %v2413 = vadd.f32 %v2364, %v2412
  %v2414 = vpop.f32.mrf.mxu0
  %v2415 = vadd.f32 %v2366, %v2414
  %2416 = vmatmul.bf16.gmra.mxu0 %v2150
  %v2417 = vpop.f32.mrf.mxu0
  %v2418 = vadd.f32 %v2369, %v2417
  %v2419 = vpop.f32.mrf.mxu0
  %v2420 = vadd.f32 %v2371, %v2419
  %2421 = vmatmul.bf16.gmra.mxu0 %v2152
  %v2422 = vpop.f32.mrf.mxu0
  %v2423 = vadd.f32 %v2374, %v2422
  %v2424 = vpop.f32.mrf.mxu0
  %v2425 = vadd.f32 %v2376, %v2424
  %2426 = vdwg.mxu0
  %2427 = vmatpush.bf16.msra.mxu0 %v2280
  %2428 = vmatpush.bf16.msra.mxu0 %v2278
  %2429 = vmatpush.bf16.msra.mxu0 %v2276
  %2430 = vmatpush.bf16.msra.mxu0 %v2274
  %2431 = vmatpush.bf16.msra.mxu0 %v2272
  %2432 = vmatpush.bf16.msra.mxu0 %v2270
  %2433 = vmatpush.bf16.msra.mxu0 %v2268
  %2434 = vmatpush.bf16.msra.mxu0 %v2266
  %2435 = vmatmul.bf16.gmra.mxu0 %v2137
  %v2436 = vpop.f32.mrf.mxu0
  %v2437 = vadd.f32 0.0, %v2436
  %v2438 = vpop.f32.mrf.mxu0
  %v2439 = vadd.f32 0.0, %v2438
  %2440 = vmatmul.bf16.gmra.mxu0 %v2139
  %v2441 = vpop.f32.mrf.mxu0
  %v2442 = vadd.f32 0.0, %v2441
  %v2443 = vpop.f32.mrf.mxu0
  %v2444 = vadd.f32 0.0, %v2443
  %2445 = vmatmul.bf16.gmra.mxu0 %v2141
  %v2446 = vpop.f32.mrf.mxu0
  %v2447 = vadd.f32 0.0, %v2446
  %v2448 = vpop.f32.mrf.mxu0
  %v2449 = vadd.f32 0.0, %v2448
  %2450 = vmatmul.bf16.gmra.mxu0 %v2143
  %v2451 = vpop.f32.mrf.mxu0
  %v2452 = vadd.f32 0.0, %v2451
  %v2453 = vpop.f32.mrf.mxu0
  %v2454 = vadd.f32 0.0, %v2453
  %2455 = vmatmul.bf16.gmra.mxu0 %v2145
  %v2456 = vpop.f32.mrf.mxu0
  %v2457 = vadd.f32 0.0, %v2456
  %v2458 = vpop.f32.mrf.mxu0
  %v2459 = vadd.f32 0.0, %v2458
  %2460 = vmatmul.bf16.gmra.mxu0 %v2147
  %v2461 = vpop.f32.mrf.mxu0
  %v2462 = vadd.f32 0.0, %v2461
  %v2463 = vpop.f32.mrf.mxu0
  %v2464 = vadd.f32 0.0, %v2463
  %2465 = vmatmul.bf16.gmra.mxu0 %v2149
  %v2466 = vpop.f32.mrf.mxu0
  %v2467 = vadd.f32 0.0, %v2466
  %v2468 = vpop.f32.mrf.mxu0
  %v2469 = vadd.f32 0.0, %v2468
  %2470 = vmatmul.bf16.gmra.mxu0 %v2151
  %v2471 = vpop.f32.mrf.mxu0
  %v2472 = vadd.f32 0.0, %v2471
  %v2473 = vpop.f32.mrf.mxu0
  %v2474 = vadd.f32 0.0, %v2473
  %2475 = vdwg.mxu0
  %2476 = vmatpush.bf16.msra.mxu0 %v2296
  %2477 = vmatpush.bf16.msra.mxu0 %v2294
  %2478 = vmatpush.bf16.msra.mxu0 %v2292
  %2479 = vmatpush.bf16.msra.mxu0 %v2290
  %2480 = vmatpush.bf16.msra.mxu0 %v2288
  %2481 = vmatpush.bf16.msra.mxu0 %v2286
  %2482 = vmatpush.bf16.msra.mxu0 %v2284
  %2483 = vmatpush.bf16.msra.mxu0 %v2282
  %2484 = vmatmul.bf16.gmra.mxu0 %v2138
  %v2485 = vpop.f32.mrf.mxu0
  %v2486 = vadd.f32 %v2437, %v2485
  %v2487 = vpop.f32.mrf.mxu0
  %v2488 = vadd.f32 %v2439, %v2487
  %2489 = vmatmul.bf16.gmra.mxu0 %v2140
  %v2490 = vpop.f32.mrf.mxu0
  %v2491 = vadd.f32 %v2442, %v2490
  %v2492 = vpop.f32.mrf.mxu0
  %v2493 = vadd.f32 %v2444, %v2492
  %2494 = vmatmul.bf16.gmra.mxu0 %v2142
  %v2495 = vpop.f32.mrf.mxu0
  %v2496 = vadd.f32 %v2447, %v2495
  %v2497 = vpop.f32.mrf.mxu0
  %v2498 = vadd.f32 %v2449, %v2497
  %2499 = vmatmul.bf16.gmra.mxu0 %v2144
  %v2500 = vpop.f32.mrf.mxu0
  %v2501 = vadd.f32 %v2452, %v2500
  %v2502 = vpop.f32.mrf.mxu0
  %v2503 = vadd.f32 %v2454, %v2502
  %2504 = vmatmul.bf16.gmra.mxu0 %v2146
  %v2505 = vpop.f32.mrf.mxu0
  %v2506 = vadd.f32 %v2457, %v2505
  %v2507 = vpop.f32.mrf.mxu0
  %v2508 = vadd.f32 %v2459, %v2507
  %2509 = vmatmul.bf16.gmra.mxu0 %v2148
  %v2510 = vpop.f32.mrf.mxu0
  %v2511 = vadd.f32 %v2462, %v2510
  %v2512 = vpop.f32.mrf.mxu0
  %v2513 = vadd.f32 %v2464, %v2512
  %2514 = vmatmul.bf16.gmra.mxu0 %v2150
  %v2515 = vpop.f32.mrf.mxu0
  %v2516 = vadd.f32 %v2467, %v2515
  %v2517 = vpop.f32.mrf.mxu0
  %v2518 = vadd.f32 %v2469, %v2517
  %2519 = vmatmul.bf16.gmra.mxu0 %v2152
  %v2520 = vpop.f32.mrf.mxu0
  %v2521 = vadd.f32 %v2472, %v2520
  %v2522 = vpop.f32.mrf.mxu0
  %v2523 = vadd.f32 %v2474, %v2522
  %2524 = vdwg.mxu0
  %v2525 = vld [vmem:[%s4] sm:$0xff]
  %v2526 = vld [vmem:[%s4 + $0x8] sm:$0xff]
  %v2527 = vld [vmem:[%s4 + $0x10] sm:$0xff]
  %v2528 = vld [vmem:[%s4 + $0x18] sm:$0xff]
  %v2529 = vld [vmem:[%s4 + $0x20] sm:$0xff]
  %v2530 = vld [vmem:[%s4 + $0x28] sm:$0xff]
  %v2531 = vld [vmem:[%s4 + $0x30] sm:$0xff]
  %v2532 = vld [vmem:[%s4 + $0x38] sm:$0xff]
  %v2533 = vld [vmem:[%s4 + $0x40] sm:$0xff]
  %v2534 = vld [vmem:[%s4 + $0x48] sm:$0xff]
  %v2535 = vld [vmem:[%s4 + $0x50] sm:$0xff]
  %v2536 = vld [vmem:[%s4 + $0x58] sm:$0xff]
  %v2537 = vld [vmem:[%s4 + $0x60] sm:$0xff]
  %v2538 = vld [vmem:[%s4 + $0x68] sm:$0xff]
  %v2539 = vld [vmem:[%s4 + $0x70] sm:$0xff]
  %v2540 = vld [vmem:[%s4 + $0x78] sm:$0xff]
  %v2541 = vunpack.c.l.bf16 %v2525
  %v2542 = vunpack.c.h.bf16 %v2525
  %v2543 = vunpack.c.l.bf16 %v2526
  %v2544 = vunpack.c.h.bf16 %v2526
  %v2545 = vunpack.c.l.bf16 %v2527
  %v2546 = vunpack.c.h.bf16 %v2527
  %v2547 = vunpack.c.l.bf16 %v2528
  %v2548 = vunpack.c.h.bf16 %v2528
  %v2549 = vunpack.c.l.bf16 %v2529
  %v2550 = vunpack.c.h.bf16 %v2529
  %v2551 = vunpack.c.l.bf16 %v2530
  %v2552 = vunpack.c.h.bf16 %v2530
  %v2553 = vunpack.c.l.bf16 %v2531
  %v2554 = vunpack.c.h.bf16 %v2531
  %v2555 = vunpack.c.l.bf16 %v2532
  %v2556 = vunpack.c.h.bf16 %v2532
  %v2557 = vunpack.c.l.bf16 %v2533
  %v2558 = vunpack.c.h.bf16 %v2533
  %v2559 = vunpack.c.l.bf16 %v2534
  %v2560 = vunpack.c.h.bf16 %v2534
  %v2561 = vunpack.c.l.bf16 %v2535
  %v2562 = vunpack.c.h.bf16 %v2535
  %v2563 = vunpack.c.l.bf16 %v2536
  %v2564 = vunpack.c.h.bf16 %v2536
  %v2565 = vunpack.c.l.bf16 %v2537
  %v2566 = vunpack.c.h.bf16 %v2537
  %v2567 = vunpack.c.l.bf16 %v2538
  %v2568 = vunpack.c.h.bf16 %v2538
  %v2569 = vunpack.c.l.bf16 %v2539
  %v2570 = vunpack.c.h.bf16 %v2539
  %v2571 = vunpack.c.l.bf16 %v2540
  %v2572 = vunpack.c.h.bf16 %v2540
  %v2573 = vmul.f32 %v2388, %v2541
  %v2574 = vmul.f32 %v2486, %v2542
  %v2575 = vmul.f32 %v2390, %v2543
  %v2576 = vmul.f32 %v2488, %v2544
  %v2577 = vmul.f32 %v2393, %v2545
  %v2578 = vmul.f32 %v2491, %v2546
  %v2579 = vmul.f32 %v2395, %v2547
  %v2580 = vmul.f32 %v2493, %v2548
  %v2581 = vmul.f32 %v2398, %v2549
  %v2582 = vmul.f32 %v2496, %v2550
  %v2583 = vmul.f32 %v2400, %v2551
  %v2584 = vmul.f32 %v2498, %v2552
  %v2585 = vmul.f32 %v2403, %v2553
  %v2586 = vmul.f32 %v2501, %v2554
  %v2587 = vmul.f32 %v2405, %v2555
  %v2588 = vmul.f32 %v2503, %v2556
  %v2589 = vmul.f32 %v2408, %v2557
  %v2590 = vmul.f32 %v2506, %v2558
  %v2591 = vmul.f32 %v2410, %v2559
  %v2592 = vmul.f32 %v2508, %v2560
  %v2593 = vmul.f32 %v2413, %v2561
  %v2594 = vmul.f32 %v2511, %v2562
  %v2595 = vmul.f32 %v2415, %v2563
  %v2596 = vmul.f32 %v2513, %v2564
  %v2597 = vmul.f32 %v2418, %v2565
  %v2598 = vmul.f32 %v2516, %v2566
  %v2599 = vmul.f32 %v2420, %v2567
  %v2600 = vmul.f32 %v2518, %v2568
  %v2601 = vmul.f32 %v2423, %v2569
  %v2602 = vmul.f32 %v2521, %v2570
  %v2603 = vmul.f32 %v2425, %v2571
  %v2604 = vmul.f32 %v2523, %v2572
  %v2605 = vpack.c.bf16 %v2575, %v2573
  %v2606 = vpack.c.bf16 %v2576, %v2574
  %v2607 = vpack.c.bf16 %v2579, %v2577
  %v2608 = vpack.c.bf16 %v2580, %v2578
  %v2609 = vpack.c.bf16 %v2583, %v2581
  %v2610 = vpack.c.bf16 %v2584, %v2582
  %v2611 = vpack.c.bf16 %v2587, %v2585
  %v2612 = vpack.c.bf16 %v2588, %v2586
  %v2613 = vpack.c.bf16 %v2591, %v2589
  %v2614 = vpack.c.bf16 %v2592, %v2590
  %v2615 = vpack.c.bf16 %v2595, %v2593
  %v2616 = vpack.c.bf16 %v2596, %v2594
  %v2617 = vpack.c.bf16 %v2599, %v2597
  %v2618 = vpack.c.bf16 %v2600, %v2598
  %v2619 = vpack.c.bf16 %v2603, %v2601
  %v2620 = vpack.c.bf16 %v2604, %v2602
  %v2621 = vld [vmem:[%s6] sm:$0xf]
  %2622 = vmatpush.bf16.msra.mxu0 %v2619
  %2623 = vmatpush.bf16.msra.mxu0 %v2617
  %2624 = vmatpush.bf16.msra.mxu0 %v2615
  %2625 = vmatpush.bf16.msra.mxu0 %v2613
  %2626 = vmatpush.bf16.msra.mxu0 %v2611
  %2627 = vmatpush.bf16.msra.mxu0 %v2609
  %2628 = vmatpush.bf16.msra.mxu0 %v2607
  %2629 = vmatpush.bf16.msra.mxu0 %v2605
  %2630 = vmatmul.bf16.gmra.mxu0 %v2621
  %v2631 = vpop.f32.mrf.mxu0
  %v2632 = vadd.f32 0.0, %v2631
  %v2633 = vpop.f32.mrf.mxu0
  %2634 = vdwg.mxu0
  %2635 = vmatpush.bf16.msra.mxu0 %v2620
  %2636 = vmatpush.bf16.msra.mxu0 %v2618
  %2637 = vmatpush.bf16.msra.mxu0 %v2616
  %2638 = vmatpush.bf16.msra.mxu0 %v2614
  %2639 = vmatpush.bf16.msra.mxu0 %v2612
  %2640 = vmatpush.bf16.msra.mxu0 %v2610
  %2641 = vmatpush.bf16.msra.mxu0 %v2608
  %2642 = vmatpush.bf16.msra.mxu0 %v2606
  %2643 = vmatmul.bf16.gmra.mxu0 %v2621
  %v2644 = vpop.f32.mrf.mxu0
  %v2645 = vadd.f32 0.0, %v2644
  %v2646 = vpop.f32.mrf.mxu0
  %2647 = vdwg.mxu0
  %v2648 = vpack.c.bf16 %v2632, %v2632
  %v2649 = vpack.c.bf16 %v2645, %v2645
  %v2650 = vld [vmem:[%s5] sm:$0xf]
  %v2651 = vld [vmem:[%s5 + $0x4] sm:$0xf]
  %v2652 = vld [vmem:[%s5 + $0x8] sm:$0xf]
  %v2653 = vld [vmem:[%s5 + $0xc] sm:$0xf]
  %v2654 = vld [vmem:[%s5 + $0x10] sm:$0xf]
  %v2655 = vld [vmem:[%s5 + $0x14] sm:$0xf]
  %v2656 = vld [vmem:[%s5 + $0x18] sm:$0xf]
  %v2657 = vld [vmem:[%s5 + $0x1c] sm:$0xf]
  %v2658 = vld [vmem:[%s5 + $0x20] sm:$0xf]
  %v2659 = vld [vmem:[%s5 + $0x24] sm:$0xf]
  %v2660 = vld [vmem:[%s5 + $0x28] sm:$0xf]
  %v2661 = vld [vmem:[%s5 + $0x2c] sm:$0xf]
  %v2662 = vld [vmem:[%s5 + $0x30] sm:$0xf]
  %v2663 = vld [vmem:[%s5 + $0x34] sm:$0xf]
  %v2664 = vld [vmem:[%s5 + $0x38] sm:$0xf]
  %v2665 = vld [vmem:[%s5 + $0x3c] sm:$0xf]
  %v2666 = vld [vmem:[%s5 + $0x40] sm:$0xf]
  %v2667 = vld [vmem:[%s5 + $0x44] sm:$0xf]
  %v2668 = vld [vmem:[%s5 + $0x48] sm:$0xf]
  %v2669 = vld [vmem:[%s5 + $0x4c] sm:$0xf]
  %v2670 = vld [vmem:[%s7] sm:$0x1]
  %v2672 = vperm.slane %v2670, 0
  %v2694 = vunpack.c.l.b16 %v2650
  %v2695 = vunpack.c.l.b16 %v2651
  %v2696 = vunpack.c.l.b16 %v2652
  %v2697 = vunpack.c.l.b16 %v2653
  %v2698 = vunpack.c.l.b16 %v2654
  %v2699 = vunpack.c.l.b16 %v2655
  %v2700 = vunpack.c.l.b16 %v2656
  %v2701 = vunpack.c.l.b16 %v2657
  %v2702 = vunpack.c.l.b16 %v2658
  %v2703 = vunpack.c.l.b16 %v2659
  %v2704 = vunpack.c.l.b16 %v2660
  %v2705 = vunpack.c.l.b16 %v2661
  %v2706 = vunpack.c.l.b16 %v2662
  %v2707 = vunpack.c.l.b16 %v2663
  %v2708 = vunpack.c.l.b16 %v2664
  %v2709 = vunpack.c.l.b16 %v2665
  %v2710 = vunpack.c.l.b16 %v2666
  %v2711 = vunpack.c.l.b16 %v2667
  %v2712 = vunpack.c.l.b16 %v2668
  %v2713 = vunpack.c.l.b16 %v2669
  %v2714 = vpack.c.b16 %v2695, %v2694
  %v2715 = vpack.c.b16 %v2697, %v2696
  %v2716 = vpack.c.b16 %v2699, %v2698
  %v2717 = vpack.c.b16 %v2701, %v2700
  %v2718 = vpack.c.b16 %v2703, %v2702
  %v2719 = vpack.c.b16 %v2705, %v2704
  %v2720 = vpack.c.b16 %v2707, %v2706
  %v2721 = vpack.c.b16 %v2709, %v2708
  %v2722 = vpack.c.b16 %v2711, %v2710
  %v2723 = vpack.c.b16 %v2713, %v2712
  %vm2734 = vcmask 261120
  %v2736 = vsel %vm2734, %v2649, 0
  %2738 = vmatpush.bf16.msra.mxu0 %v2721
  %2739 = vmatpush.bf16.msra.mxu0 %v2720
  %2740 = vmatpush.bf16.msra.mxu0 %v2719
  %2741 = vmatpush.bf16.msra.mxu0 %v2718
  %2742 = vmatpush.bf16.msra.mxu0 %v2717
  %2743 = vmatpush.bf16.msra.mxu0 %v2716
  %2744 = vmatpush.bf16.msra.mxu0 %v2715
  %2745 = vmatpush.bf16.msra.mxu0 %v2714
  %2746 = vmatmul.bf16.gmra.mxu0 %v2648
  %v2747 = vpop.f32.mrf.mxu0
  %v2748 = vadd.f32 %v2672, %v2747
  %v2749 = vpop.f32.mrf.mxu0
  %2750 = vdwg.mxu0
  %2751 = vmatpush.bf16.msra.mxu0 0
  %2752 = vmatpush.bf16.msra.mxu0 0
  %2753 = vmatpush.bf16.msra.mxu0 0
  %2754 = vmatpush.bf16.msra.mxu0 0
  %2755 = vmatpush.bf16.msra.mxu0 0
  %2756 = vmatpush.bf16.msra.mxu0 0
  %2757 = vmatpush.bf16.msra.mxu0 %v2723
  %2758 = vmatpush.bf16.msra.mxu0 %v2722
  %2759 = vmatmul.bf16.gmra.mxu0 %v2736
  %v2760 = vpop.f32.mrf.mxu0
  %v2761 = vadd.f32 %v2748, %v2760
  %v2762 = vpop.f32.mrf.mxu0
  %2763 = vdwg.mxu0
  %2764 = vst [vmem:[%s8] sm:$0xff] %v2761
  // Predicated region
  $region34: #{cnn_oneblock_forward.1} parent=0 // pred_check
    _
  $region35: #{cnn_oneblock_forward.1} parent=0 // pred_check_branch
    %2766 = sbr.rel (0) target = $region37
  $region36: #{cnn_oneblock_forward.1} parent=0 // pred_region
    _
  $region37: #{cnn_oneblock_forward.1} parent=0 // pred_fallthru
    _
  // Predicated region
  $region38: #{cnn_oneblock_forward.1} parent=0 // pred_check
    _
  $region39: #{cnn_oneblock_forward.1} parent=0 // pred_check_branch
    %2768 = sbr.rel (0) target = $region41
  $region40: #{cnn_oneblock_forward.1} parent=0 // pred_region
    _
  $region41: #{cnn_oneblock_forward.1} parent=0 // pred_fallthru
    _

</llo_original>
